<compile_context>
chip_gen: v7x
topology: tpu7x:2x2x1
jax: 0.10.0
libtpu: 0.0.40
codegen_flags: <defaults>
</compile_context>

<pallas_src>
import functools

import jax
import jax.numpy as jnp
from jax.experimental import pallas as pl
from jax.experimental.pallas import tpu as pltpu

EPS = 1e-5


def conv_bn_relu_kernel(w_ref, x_ref, gamma_ref, beta_ref, o_ref, *, inv_m):
    # w_ref:     (Cout, Cin)  native 1x1-conv weight layout
    # x_ref:     (Cin, M)     channel-major flattened pixels (free view for N=1)
    # gamma_ref: (Cout, 1)
    # beta_ref:  (Cout, 1)
    # o_ref:     (Cout, M)
    # 1x1 convolution == per-pixel channel matmul on the MXU, f32 accumulation.
    y = jnp.dot(w_ref[...], x_ref[...], preferred_element_type=jnp.float32)  # (Cout, M)

    # Train-mode BatchNorm (biased batch variance), two-pass for robustness.
    mean = jnp.sum(y, axis=1, keepdims=True) * inv_m           # (Cout, 1)
    diff = y - mean                                            # (Cout, M)
    var = jnp.sum(diff * diff, axis=1, keepdims=True) * inv_m  # (Cout, 1)
    scale = gamma_ref[...] * jax.lax.rsqrt(var + EPS)          # (Cout, 1)

    # (y - mean) * scale + beta  ==  gamma * (y - mean) / sqrt(var+eps) + beta,
    # fused with ReLU (2 VPU ops / element).
    o_ref[...] = jnp.maximum(diff * scale + beta_ref[...], 0.0)


def _conv_bn_relu_impl(x_nchw, w_oi, gamma, beta):
    """x_nchw: (N, C, H, W) f32; w_oi: (Cout, Cin) f32 (1x1 conv weight, no bias)."""
    N, C, H, W = x_nchw.shape
    Cout, Cin = w_oi.shape
    assert Cin == C
    M = N * H * W

    if N == 1:
        # Free view: NCHW with N=1 is already channel-major over the M pixels.
        x_cm = x_nchw.reshape(Cin, M)
    else:
        # TODO(synk): N>1 needs a real transpose (module's fixed shape is N=1).
        x_cm = jnp.transpose(x_nchw, (1, 0, 2, 3)).reshape(Cin, M)

    g = gamma.reshape(Cout, 1)
    b = beta.reshape(Cout, 1)

    vmem = pl.BlockSpec(memory_space=pltpu.MemorySpace.VMEM)
    out_cm = pl.pallas_call(
        functools.partial(conv_bn_relu_kernel, inv_m=1.0 / M),
        out_shape=jax.ShapeDtypeStruct((Cout, M), jnp.float32),
        in_specs=[vmem, vmem, vmem, vmem],
        out_specs=vmem,
    )(w_oi, x_cm, g, b)

    if N == 1:
        return out_cm.reshape(1, Cout, H, W)
    return jnp.transpose(out_cm.reshape(Cout, N, H, W), (1, 0, 2, 3))


# JIT the whole wrapper so the (tiny) reshape ops fuse around the pallas call.
conv_bn_relu = jax.jit(_conv_bn_relu_impl)


@jax.jit
def reference(x_nchw, w_oi, gamma, beta):
    # Pure-JAX reference with identical semantics (train-mode BN, biased var).
    y = jnp.einsum("nchw,oc->nohw", x_nchw, w_oi)
    mean = jnp.mean(y, axis=(0, 2, 3), keepdims=True)
    var = jnp.mean((y - mean) ** 2, axis=(0, 2, 3), keepdims=True)
    y = (y - mean) / jnp.sqrt(var + EPS)
    y = y * gamma[None, :, None, None] + beta[None, :, None, None]
    return jnp.maximum(y, 0.0)


if __name__ == "__main__":
    key = jax.random.PRNGKey(0)
    k_x, k_w, k_g, k_b = jax.random.split(key, 4)

    N, C, H, W = 1, 488, 7, 7  # matches the module's fixed shapes
    x = jax.random.normal(k_x, (N, C, H, W), dtype=jnp.float32)
    # Deterministic synthetic parameters (Conv2d has bias=False).
    conv_w = jax.random.normal(k_w, (C, C), dtype=jnp.float32) * 0.05  # (Cout, Cin)
    gamma = 1.0 + 0.1 * jax.random.normal(k_g, (C,), dtype=jnp.float32)
    beta = 0.1 * jax.random.normal(k_b, (C,), dtype=jnp.float32)

    out = jax.block_until_ready(conv_bn_relu(x, conv_w, gamma, beta))
    ref = jax.block_until_ready(reference(x, conv_w, gamma, beta))

    assert out.shape == (N, C, H, W)
    assert jnp.allclose(out, ref, atol=1e-3, rtol=1e-3), float(jnp.max(jnp.abs(out - ref)))

    print("KERNEL_OK")
</pallas_src>

<mosaic_0001>
module attributes {stable_mosaic.version = 11 : i64} {
  func.func @conv_bn_relu_kernel(%arg0: memref<488x488xf32, #tpu.memory_space<vmem>>, %arg1: memref<488x49xf32, #tpu.memory_space<vmem>>, %arg2: memref<488x1xf32, #tpu.memory_space<vmem>>, %arg3: memref<488x1xf32, #tpu.memory_space<vmem>>, %arg4: memref<488x49xf32, #tpu.memory_space<vmem>>) attributes {dimension_semantics = [], scalar_prefetch = 0 : i64, scratch_operands = 0 : i64, tpu.core_type = #tpu.core_type<tc>} {
    %c0 = arith.constant 0 : index
    %c0_0 = arith.constant 0 : index
    %0 = vector.load %arg0[%c0, %c0_0] : memref<488x488xf32, #tpu.memory_space<vmem>>, vector<488x488xf32>
    %c0_1 = arith.constant 0 : index
    %c0_2 = arith.constant 0 : index
    %1 = vector.load %arg1[%c0_1, %c0_2] : memref<488x49xf32, #tpu.memory_space<vmem>>, vector<488x49xf32>
    %cst = arith.constant dense<0.000000e+00> : vector<488x49xf32>
    %2 = tpu.matmul %0, %1, %cst {dimension_numbers = #tpu.dot_dimension_numbers<[1], [0], [0], [1], [0, 0, 1, 1], [], []>} : vector<488x488xf32>, vector<488x49xf32>, vector<488x49xf32> -> vector<488x49xf32>
    %cst_3 = arith.constant dense<0.000000e+00> : vector<488xf32>
    %3 = vector.multi_reduction <add>, %2, %cst_3 [1] : vector<488x49xf32> to vector<488xf32>
    %4 = vector.shape_cast %3 : vector<488xf32> to vector<488x1xf32>
    %cst_4 = arith.constant 0.0204081628 : f32
    %5 = vector.broadcast %cst_4 : f32 to vector<488x1xf32>
    %6 = arith.mulf %4, %5 : vector<488x1xf32>
    %7 = vector.broadcast %6 : vector<488x1xf32> to vector<488x49xf32>
    %8 = arith.subf %2, %7 : vector<488x49xf32>
    %9 = arith.mulf %8, %8 : vector<488x49xf32>
    %cst_5 = arith.constant dense<0.000000e+00> : vector<488xf32>
    %10 = vector.multi_reduction <add>, %9, %cst_5 [1] : vector<488x49xf32> to vector<488xf32>
    %11 = vector.shape_cast %10 : vector<488xf32> to vector<488x1xf32>
    %cst_6 = arith.constant 0.0204081628 : f32
    %12 = vector.broadcast %cst_6 : f32 to vector<488x1xf32>
    %13 = arith.mulf %11, %12 : vector<488x1xf32>
    %c0_7 = arith.constant 0 : index
    %c0_8 = arith.constant 0 : index
    %14 = vector.load %arg2[%c0_7, %c0_8] : memref<488x1xf32, #tpu.memory_space<vmem>>, vector<488x1xf32>
    %cst_9 = arith.constant 9.99999974E-6 : f32
    %15 = vector.broadcast %cst_9 : f32 to vector<488x1xf32>
    %16 = arith.addf %13, %15 : vector<488x1xf32>
    %17 = math.rsqrt %16 : vector<488x1xf32>
    %18 = arith.mulf %14, %17 : vector<488x1xf32>
    %19 = vector.broadcast %18 : vector<488x1xf32> to vector<488x49xf32>
    %20 = arith.mulf %8, %19 : vector<488x49xf32>
    %c0_10 = arith.constant 0 : index
    %c0_11 = arith.constant 0 : index
    %21 = vector.load %arg3[%c0_10, %c0_11] : memref<488x1xf32, #tpu.memory_space<vmem>>, vector<488x1xf32>
    %22 = vector.broadcast %21 : vector<488x1xf32> to vector<488x49xf32>
    %23 = arith.addf %20, %22 : vector<488x49xf32>
    %cst_12 = arith.constant 0.000000e+00 : f32
    %24 = vector.broadcast %cst_12 : f32 to vector<488x49xf32>
    %25 = arith.maximumf %23, %24 : vector<488x49xf32>
    %c0_13 = arith.constant 0 : index
    %c0_14 = arith.constant 0 : index
    %26 = vector.load %arg4[%c0_13, %c0_14] : memref<488x49xf32, #tpu.memory_space<vmem>>, vector<488x49xf32>
    tpu.vector_store %arg4[%c0_13, %c0_14], %25 {strides = array<i32>} : memref<488x49xf32, #tpu.memory_space<vmem>>, vector<488x49xf32>,
    return
  }
}

</mosaic_0001>

<llo_original>
// kernel: _conv_bn_relu_impl.1
$region0: #{_conv_bn_relu_impl.1}
  #allocation0 [shape = 'u32[]', space=smem, size = 0x4, offset = 0x4, fixed_abs, tag = 'smem constant byte address 0x4 - core index']
  #allocation1 [shape = 'u32[144,128]{1,0:T(1,128)}', space=vmem, size = 0x12000, scoped, tag = 'internal scratch']
  %s0 = inlined_call_operand.vmem [shape: f32[488,488], index: 0, kind: input, shape index: {}]
  %s1 = inlined_call_operand.vmem [shape: f32[488,49], index: 1, kind: input, shape index: {}]
  %s2 = inlined_call_operand.vmem [shape: f32[488,1], index: 2, kind: input, shape index: {}]
  %s3 = inlined_call_operand.vmem [shape: f32[488,1], index: 3, kind: input, shape index: {}]
  %s4 = inlined_call_operand.vmem [shape: f32[488,49], index: 4, kind: output, shape index: {}]
  %s5 = sld [smem:[#allocation0]]
  $region26: #{_conv_bn_relu_impl.1} parent=0
    _
  %s7 = ssub.s32 1, %s5
  %s8 = scalar_select 0, %s7, %s5
  // Predicated region
  $region2: #{_conv_bn_relu_impl.1} parent=0 // pred_check
    _
  $region3: #{_conv_bn_relu_impl.1} parent=0 // pred_check_branch
    %10 = sbr.rel (0) target = $region5
  $region4: #{_conv_bn_relu_impl.1} parent=0 // pred_region
    _
  $region5: #{_conv_bn_relu_impl.1} parent=0 // pred_fallthru
    _
  // Predicated region
  $region6: #{_conv_bn_relu_impl.1} parent=0 // pred_check
    _
  $region7: #{_conv_bn_relu_impl.1} parent=0 // pred_check_branch
    %12 = sbr.rel (0) target = $region9
  $region8: #{_conv_bn_relu_impl.1} parent=0 // pred_region
    _
  $region9: #{_conv_bn_relu_impl.1} parent=0 // pred_fallthru
    _
  // Predicated region
  $region10: #{_conv_bn_relu_impl.1} parent=0 // pred_check
    _
  $region11: #{_conv_bn_relu_impl.1} parent=0 // pred_check_branch
    %14 = sbr.rel (0) target = $region13
  $region12: #{_conv_bn_relu_impl.1} parent=0 // pred_region
    _
  $region13: #{_conv_bn_relu_impl.1} parent=0 // pred_fallthru
    _
  // Predicated region
  $region14: #{_conv_bn_relu_impl.1} parent=0 // pred_check
    _
  $region15: #{_conv_bn_relu_impl.1} parent=0 // pred_check_branch
    %16 = sbr.rel (0) target = $region17
  $region16: #{_conv_bn_relu_impl.1} parent=0 // pred_region
    _
  $region17: #{_conv_bn_relu_impl.1} parent=0 // pred_fallthru
    _
  %v17 = vld [vmem:[%s0] sm:$0xff]
  %v18 = vld [vmem:[%s0 + $0x8] sm:$0xff]
  %v19 = vld [vmem:[%s0 + $0x10] sm:$0xff]
  %v20 = vld [vmem:[%s0 + $0x18] sm:$0xff]
  %v21 = vld [vmem:[%s0 + $0x20] sm:$0xff]
  %v22 = vld [vmem:[%s0 + $0x28] sm:$0xff]
  %v23 = vld [vmem:[%s0 + $0x30] sm:$0xff]
  %v24 = vld [vmem:[%s0 + $0x38] sm:$0xff]
  %v25 = vld [vmem:[%s0 + $0x40] sm:$0xff]
  %v26 = vld [vmem:[%s0 + $0x48] sm:$0xff]
  %v27 = vld [vmem:[%s0 + $0x50] sm:$0xff]
  %v28 = vld [vmem:[%s0 + $0x58] sm:$0xff]
  %v29 = vld [vmem:[%s0 + $0x60] sm:$0xff]
  %v30 = vld [vmem:[%s0 + $0x68] sm:$0xff]
  %v31 = vld [vmem:[%s0 + $0x70] sm:$0xff]
  %v32 = vld [vmem:[%s0 + $0x78] sm:$0xff]
  %v33 = vld [vmem:[%s0 + $0x80] sm:$0xff]
  %v34 = vld [vmem:[%s0 + $0x88] sm:$0xff]
  %v35 = vld [vmem:[%s0 + $0x90] sm:$0xff]
  %v36 = vld [vmem:[%s0 + $0x98] sm:$0xff]
  %v37 = vld [vmem:[%s0 + $0xa0] sm:$0xff]
  %v38 = vld [vmem:[%s0 + $0xa8] sm:$0xff]
  %v39 = vld [vmem:[%s0 + $0xb0] sm:$0xff]
  %v40 = vld [vmem:[%s0 + $0xb8] sm:$0xff]
  %v41 = vld [vmem:[%s0 + $0xc0] sm:$0xff]
  %v42 = vld [vmem:[%s0 + $0xc8] sm:$0xff]
  %v43 = vld [vmem:[%s0 + $0xd0] sm:$0xff]
  %v44 = vld [vmem:[%s0 + $0xd8] sm:$0xff]
  %v45 = vld [vmem:[%s0 + $0xe0] sm:$0xff]
  %v46 = vld [vmem:[%s0 + $0xe8] sm:$0xff]
  %v47 = vld [vmem:[%s0 + $0xf0] sm:$0xff]
  %v48 = vld [vmem:[%s0 + $0xf8] sm:$0xff]
  %v49 = vld [vmem:[%s0 + $0x100] sm:$0xff]
  %v50 = vld [vmem:[%s0 + $0x108] sm:$0xff]
  %v51 = vld [vmem:[%s0 + $0x110] sm:$0xff]
  %v52 = vld [vmem:[%s0 + $0x118] sm:$0xff]
  %v53 = vld [vmem:[%s0 + $0x120] sm:$0xff]
  %v54 = vld [vmem:[%s0 + $0x128] sm:$0xff]
  %v55 = vld [vmem:[%s0 + $0x130] sm:$0xff]
  %v56 = vld [vmem:[%s0 + $0x138] sm:$0xff]
  %v57 = vld [vmem:[%s0 + $0x140] sm:$0xff]
  %v58 = vld [vmem:[%s0 + $0x148] sm:$0xff]
  %v59 = vld [vmem:[%s0 + $0x150] sm:$0xff]
  %v60 = vld [vmem:[%s0 + $0x158] sm:$0xff]
  %v61 = vld [vmem:[%s0 + $0x160] sm:$0xff]
  %v62 = vld [vmem:[%s0 + $0x168] sm:$0xff]
  %v63 = vld [vmem:[%s0 + $0x170] sm:$0xff]
  %v64 = vld [vmem:[%s0 + $0x178] sm:$0xff]
  %v65 = vld [vmem:[%s0 + $0x180] sm:$0xff]
  %v66 = vld [vmem:[%s0 + $0x188] sm:$0xff]
  %v67 = vld [vmem:[%s0 + $0x190] sm:$0xff]
  %v68 = vld [vmem:[%s0 + $0x198] sm:$0xff]
  %v69 = vld [vmem:[%s0 + $0x1a0] sm:$0xff]
  %v70 = vld [vmem:[%s0 + $0x1a8] sm:$0xff]
  %v71 = vld [vmem:[%s0 + $0x1b0] sm:$0xff]
  %v72 = vld [vmem:[%s0 + $0x1b8] sm:$0xff]
  %v73 = vld [vmem:[%s0 + $0x1c0] sm:$0xff]
  %v74 = vld [vmem:[%s0 + $0x1c8] sm:$0xff]
  %v75 = vld [vmem:[%s0 + $0x1d0] sm:$0xff]
  %v76 = vld [vmem:[%s0 + $0x1d8] sm:$0xff]
  %v77 = vld [vmem:[%s0 + $0x1e0] sm:$0xff]
  %v78 = vld [vmem:[%s0 + $0x1e8] sm:$0xff]
  %v79 = vld [vmem:[%s0 + $0x1f0] sm:$0xff]
  %v80 = vld [vmem:[%s0 + $0x1f8] sm:$0xff]
  %v81 = vld [vmem:[%s0 + $0x200] sm:$0xff]
  %v82 = vld [vmem:[%s0 + $0x208] sm:$0xff]
  %v83 = vld [vmem:[%s0 + $0x210] sm:$0xff]
  %v84 = vld [vmem:[%s0 + $0x218] sm:$0xff]
  %v85 = vld [vmem:[%s0 + $0x220] sm:$0xff]
  %v86 = vld [vmem:[%s0 + $0x228] sm:$0xff]
  %v87 = vld [vmem:[%s0 + $0x230] sm:$0xff]
  %v88 = vld [vmem:[%s0 + $0x238] sm:$0xff]
  %v89 = vld [vmem:[%s0 + $0x240] sm:$0xff]
  %v90 = vld [vmem:[%s0 + $0x248] sm:$0xff]
  %v91 = vld [vmem:[%s0 + $0x250] sm:$0xff]
  %v92 = vld [vmem:[%s0 + $0x258] sm:$0xff]
  %v93 = vld [vmem:[%s0 + $0x260] sm:$0xff]
  %v94 = vld [vmem:[%s0 + $0x268] sm:$0xff]
  %v95 = vld [vmem:[%s0 + $0x270] sm:$0xff]
  %v96 = vld [vmem:[%s0 + $0x278] sm:$0xff]
  %v97 = vld [vmem:[%s0 + $0x280] sm:$0xff]
  %v98 = vld [vmem:[%s0 + $0x288] sm:$0xff]
  %v99 = vld [vmem:[%s0 + $0x290] sm:$0xff]
  %v100 = vld [vmem:[%s0 + $0x298] sm:$0xff]
  %v101 = vld [vmem:[%s0 + $0x2a0] sm:$0xff]
  %v102 = vld [vmem:[%s0 + $0x2a8] sm:$0xff]
  %v103 = vld [vmem:[%s0 + $0x2b0] sm:$0xff]
  %v104 = vld [vmem:[%s0 + $0x2b8] sm:$0xff]
  %v105 = vld [vmem:[%s0 + $0x2c0] sm:$0xff]
  %v106 = vld [vmem:[%s0 + $0x2c8] sm:$0xff]
  %v107 = vld [vmem:[%s0 + $0x2d0] sm:$0xff]
  %v108 = vld [vmem:[%s0 + $0x2d8] sm:$0xff]
  %v109 = vld [vmem:[%s0 + $0x2e0] sm:$0xff]
  %v110 = vld [vmem:[%s0 + $0x2e8] sm:$0xff]
  %v111 = vld [vmem:[%s0 + $0x2f0] sm:$0xff]
  %v112 = vld [vmem:[%s0 + $0x2f8] sm:$0xff]
  %v113 = vld [vmem:[%s0 + $0x300] sm:$0xff]
  %v114 = vld [vmem:[%s0 + $0x308] sm:$0xff]
  %v115 = vld [vmem:[%s0 + $0x310] sm:$0xff]
  %v116 = vld [vmem:[%s0 + $0x318] sm:$0xff]
  %v117 = vld [vmem:[%s0 + $0x320] sm:$0xff]
  %v118 = vld [vmem:[%s0 + $0x328] sm:$0xff]
  %v119 = vld [vmem:[%s0 + $0x330] sm:$0xff]
  %v120 = vld [vmem:[%s0 + $0x338] sm:$0xff]
  %v121 = vld [vmem:[%s0 + $0x340] sm:$0xff]
  %v122 = vld [vmem:[%s0 + $0x348] sm:$0xff]
  %v123 = vld [vmem:[%s0 + $0x350] sm:$0xff]
  %v124 = vld [vmem:[%s0 + $0x358] sm:$0xff]
  %v125 = vld [vmem:[%s0 + $0x360] sm:$0xff]
  %v126 = vld [vmem:[%s0 + $0x368] sm:$0xff]
  %v127 = vld [vmem:[%s0 + $0x370] sm:$0xff]
  %v128 = vld [vmem:[%s0 + $0x378] sm:$0xff]
  %v129 = vld [vmem:[%s0 + $0x380] sm:$0xff]
  %v130 = vld [vmem:[%s0 + $0x388] sm:$0xff]
  %v131 = vld [vmem:[%s0 + $0x390] sm:$0xff]
  %v132 = vld [vmem:[%s0 + $0x398] sm:$0xff]
  %v133 = vld [vmem:[%s0 + $0x3a0] sm:$0xff]
  %v134 = vld [vmem:[%s0 + $0x3a8] sm:$0xff]
  %v135 = vld [vmem:[%s0 + $0x3b0] sm:$0xff]
  %v136 = vld [vmem:[%s0 + $0x3b8] sm:$0xff]
  %v137 = vld [vmem:[%s0 + $0x3c0] sm:$0xff]
  %v138 = vld [vmem:[%s0 + $0x3c8] sm:$0xff]
  %v139 = vld [vmem:[%s0 + $0x3d0] sm:$0xff]
  %v140 = vld [vmem:[%s0 + $0x3d8] sm:$0xff]
  %v141 = vld [vmem:[%s0 + $0x3e0] sm:$0xff]
  %v142 = vld [vmem:[%s0 + $0x3e8] sm:$0xff]
  %v143 = vld [vmem:[%s0 + $0x3f0] sm:$0xff]
  %v144 = vld [vmem:[%s0 + $0x3f8] sm:$0xff]
  %v145 = vld [vmem:[%s0 + $0x400] sm:$0xff]
  %v146 = vld [vmem:[%s0 + $0x408] sm:$0xff]
  %v147 = vld [vmem:[%s0 + $0x410] sm:$0xff]
  %v148 = vld [vmem:[%s0 + $0x418] sm:$0xff]
  %v149 = vld [vmem:[%s0 + $0x420] sm:$0xff]
  %v150 = vld [vmem:[%s0 + $0x428] sm:$0xff]
  %v151 = vld [vmem:[%s0 + $0x430] sm:$0xff]
  %v152 = vld [vmem:[%s0 + $0x438] sm:$0xff]
  %v153 = vld [vmem:[%s0 + $0x440] sm:$0xff]
  %v154 = vld [vmem:[%s0 + $0x448] sm:$0xff]
  %v155 = vld [vmem:[%s0 + $0x450] sm:$0xff]
  %v156 = vld [vmem:[%s0 + $0x458] sm:$0xff]
  %v157 = vld [vmem:[%s0 + $0x460] sm:$0xff]
  %v158 = vld [vmem:[%s0 + $0x468] sm:$0xff]
  %v159 = vld [vmem:[%s0 + $0x470] sm:$0xff]
  %v160 = vld [vmem:[%s0 + $0x478] sm:$0xff]
  %v161 = vld [vmem:[%s0 + $0x480] sm:$0xff]
  %v162 = vld [vmem:[%s0 + $0x488] sm:$0xff]
  %v163 = vld [vmem:[%s0 + $0x490] sm:$0xff]
  %v164 = vld [vmem:[%s0 + $0x498] sm:$0xff]
  %v165 = vld [vmem:[%s0 + $0x4a0] sm:$0xff]
  %v166 = vld [vmem:[%s0 + $0x4a8] sm:$0xff]
  %v167 = vld [vmem:[%s0 + $0x4b0] sm:$0xff]
  %v168 = vld [vmem:[%s0 + $0x4b8] sm:$0xff]
  %v169 = vld [vmem:[%s0 + $0x4c0] sm:$0xff]
  %v170 = vld [vmem:[%s0 + $0x4c8] sm:$0xff]
  %v171 = vld [vmem:[%s0 + $0x4d0] sm:$0xff]
  %v172 = vld [vmem:[%s0 + $0x4d8] sm:$0xff]
  %v173 = vld [vmem:[%s0 + $0x4e0] sm:$0xff]
  %v174 = vld [vmem:[%s0 + $0x4e8] sm:$0xff]
  %v175 = vld [vmem:[%s0 + $0x4f0] sm:$0xff]
  %v176 = vld [vmem:[%s0 + $0x4f8] sm:$0xff]
  %v177 = vld [vmem:[%s0 + $0x500] sm:$0xff]
  %v178 = vld [vmem:[%s0 + $0x508] sm:$0xff]
  %v179 = vld [vmem:[%s0 + $0x510] sm:$0xff]
  %v180 = vld [vmem:[%s0 + $0x518] sm:$0xff]
  %v181 = vld [vmem:[%s0 + $0x520] sm:$0xff]
  %v182 = vld [vmem:[%s0 + $0x528] sm:$0xff]
  %v183 = vld [vmem:[%s0 + $0x530] sm:$0xff]
  %v184 = vld [vmem:[%s0 + $0x538] sm:$0xff]
  %v185 = vld [vmem:[%s0 + $0x540] sm:$0xff]
  %v186 = vld [vmem:[%s0 + $0x548] sm:$0xff]
  %v187 = vld [vmem:[%s0 + $0x550] sm:$0xff]
  %v188 = vld [vmem:[%s0 + $0x558] sm:$0xff]
  %v189 = vld [vmem:[%s0 + $0x560] sm:$0xff]
  %v190 = vld [vmem:[%s0 + $0x568] sm:$0xff]
  %v191 = vld [vmem:[%s0 + $0x570] sm:$0xff]
  %v192 = vld [vmem:[%s0 + $0x578] sm:$0xff]
  %v193 = vld [vmem:[%s0 + $0x580] sm:$0xff]
  %v194 = vld [vmem:[%s0 + $0x588] sm:$0xff]
  %v195 = vld [vmem:[%s0 + $0x590] sm:$0xff]
  %v196 = vld [vmem:[%s0 + $0x598] sm:$0xff]
  %v197 = vld [vmem:[%s0 + $0x5a0] sm:$0xff]
  %v198 = vld [vmem:[%s0 + $0x5a8] sm:$0xff]
  %v199 = vld [vmem:[%s0 + $0x5b0] sm:$0xff]
  %v200 = vld [vmem:[%s0 + $0x5b8] sm:$0xff]
  %v201 = vld [vmem:[%s0 + $0x5c0] sm:$0xff]
  %v202 = vld [vmem:[%s0 + $0x5c8] sm:$0xff]
  %v203 = vld [vmem:[%s0 + $0x5d0] sm:$0xff]
  %v204 = vld [vmem:[%s0 + $0x5d8] sm:$0xff]
  %v205 = vld [vmem:[%s0 + $0x5e0] sm:$0xff]
  %v206 = vld [vmem:[%s0 + $0x5e8] sm:$0xff]
  %v207 = vld [vmem:[%s0 + $0x5f0] sm:$0xff]
  %v208 = vld [vmem:[%s0 + $0x5f8] sm:$0xff]
  %v209 = vld [vmem:[%s0 + $0x600] sm:$0xff]
  %v210 = vld [vmem:[%s0 + $0x608] sm:$0xff]
  %v211 = vld [vmem:[%s0 + $0x610] sm:$0xff]
  %v212 = vld [vmem:[%s0 + $0x618] sm:$0xff]
  %v213 = vld [vmem:[%s0 + $0x620] sm:$0xff]
  %v214 = vld [vmem:[%s0 + $0x628] sm:$0xff]
  %v215 = vld [vmem:[%s0 + $0x630] sm:$0xff]
  %v216 = vld [vmem:[%s0 + $0x638] sm:$0xff]
  %v217 = vld [vmem:[%s0 + $0x640] sm:$0xff]
  %v218 = vld [vmem:[%s0 + $0x648] sm:$0xff]
  %v219 = vld [vmem:[%s0 + $0x650] sm:$0xff]
  %v220 = vld [vmem:[%s0 + $0x658] sm:$0xff]
  %v221 = vld [vmem:[%s0 + $0x660] sm:$0xff]
  %v222 = vld [vmem:[%s0 + $0x668] sm:$0xff]
  %v223 = vld [vmem:[%s0 + $0x670] sm:$0xff]
  %v224 = vld [vmem:[%s0 + $0x678] sm:$0xff]
  %v225 = vld [vmem:[%s0 + $0x680] sm:$0xff]
  %v226 = vld [vmem:[%s0 + $0x688] sm:$0xff]
  %v227 = vld [vmem:[%s0 + $0x690] sm:$0xff]
  %v228 = vld [vmem:[%s0 + $0x698] sm:$0xff]
  %v229 = vld [vmem:[%s0 + $0x6a0] sm:$0xff]
  %v230 = vld [vmem:[%s0 + $0x6a8] sm:$0xff]
  %v231 = vld [vmem:[%s0 + $0x6b0] sm:$0xff]
  %v232 = vld [vmem:[%s0 + $0x6b8] sm:$0xff]
  %v233 = vld [vmem:[%s0 + $0x6c0] sm:$0xff]
  %v234 = vld [vmem:[%s0 + $0x6c8] sm:$0xff]
  %v235 = vld [vmem:[%s0 + $0x6d0] sm:$0xff]
  %v236 = vld [vmem:[%s0 + $0x6d8] sm:$0xff]
  %v237 = vld [vmem:[%s0 + $0x6e0] sm:$0xff]
  %v238 = vld [vmem:[%s0 + $0x6e8] sm:$0xff]
  %v239 = vld [vmem:[%s0 + $0x6f0] sm:$0xff]
  %v240 = vld [vmem:[%s0 + $0x6f8] sm:$0xff]
  %v241 = vld [vmem:[%s0 + $0x700] sm:$0xff]
  %v242 = vld [vmem:[%s0 + $0x708] sm:$0xff]
  %v243 = vld [vmem:[%s0 + $0x710] sm:$0xff]
  %v244 = vld [vmem:[%s0 + $0x718] sm:$0xff]
  %v245 = vld [vmem:[%s0 + $0x720] sm:$0xff]
  %v246 = vld [vmem:[%s0 + $0x728] sm:$0xff]
  %v247 = vld [vmem:[%s0 + $0x730] sm:$0xff]
  %v248 = vld [vmem:[%s0 + $0x738] sm:$0xff]
  %v249 = vld [vmem:[%s0 + $0x740] sm:$0xff]
  %v250 = vld [vmem:[%s0 + $0x748] sm:$0xff]
  %v251 = vld [vmem:[%s0 + $0x750] sm:$0xff]
  %v252 = vld [vmem:[%s0 + $0x758] sm:$0xff]
  %v253 = vld [vmem:[%s0 + $0x760] sm:$0xff]
  %v254 = vld [vmem:[%s0 + $0x768] sm:$0xff]
  %v255 = vld [vmem:[%s0 + $0x770] sm:$0xff]
  %v256 = vld [vmem:[%s0 + $0x778] sm:$0xff]
  %v257 = vld [vmem:[%s0 + $0x780] sm:$0xff]
  %v258 = vld [vmem:[%s0 + $0x788] sm:$0xff]
  %v259 = vld [vmem:[%s0 + $0x790] sm:$0xff]
  %v260 = vld [vmem:[%s0 + $0x798] sm:$0xff]
  %v261 = vld [vmem:[%s1] sm:$0xff]
  %v262 = vld [vmem:[%s1 + $0x8] sm:$0xff]
  %v263 = vld [vmem:[%s1 + $0x10] sm:$0xff]
  %v264 = vld [vmem:[%s1 + $0x18] sm:$0xff]
  %v265 = vld [vmem:[%s1 + $0x20] sm:$0xff]
  %v266 = vld [vmem:[%s1 + $0x28] sm:$0xff]
  %v267 = vld [vmem:[%s1 + $0x30] sm:$0xff]
  %v268 = vld [vmem:[%s1 + $0x38] sm:$0xff]
  %v269 = vld [vmem:[%s1 + $0x40] sm:$0xff]
  %v270 = vld [vmem:[%s1 + $0x48] sm:$0xff]
  %v271 = vld [vmem:[%s1 + $0x50] sm:$0xff]
  %v272 = vld [vmem:[%s1 + $0x58] sm:$0xff]
  %v273 = vld [vmem:[%s1 + $0x60] sm:$0xff]
  %v274 = vld [vmem:[%s1 + $0x68] sm:$0xff]
  %v275 = vld [vmem:[%s1 + $0x70] sm:$0xff]
  %v276 = vld [vmem:[%s1 + $0x78] sm:$0xff]
  %v277 = vld [vmem:[%s1 + $0x80] sm:$0xff]
  %v278 = vld [vmem:[%s1 + $0x88] sm:$0xff]
  %v279 = vld [vmem:[%s1 + $0x90] sm:$0xff]
  %v280 = vld [vmem:[%s1 + $0x98] sm:$0xff]
  %v281 = vld [vmem:[%s1 + $0xa0] sm:$0xff]
  %v282 = vld [vmem:[%s1 + $0xa8] sm:$0xff]
  %v283 = vld [vmem:[%s1 + $0xb0] sm:$0xff]
  %v284 = vld [vmem:[%s1 + $0xb8] sm:$0xff]
  %v285 = vld [vmem:[%s1 + $0xc0] sm:$0xff]
  %v286 = vld [vmem:[%s1 + $0xc8] sm:$0xff]
  %v287 = vld [vmem:[%s1 + $0xd0] sm:$0xff]
  %v288 = vld [vmem:[%s1 + $0xd8] sm:$0xff]
  %v289 = vld [vmem:[%s1 + $0xe0] sm:$0xff]
  %v290 = vld [vmem:[%s1 + $0xe8] sm:$0xff]
  %v291 = vld [vmem:[%s1 + $0xf0] sm:$0xff]
  %v292 = vld [vmem:[%s1 + $0xf8] sm:$0xff]
  %v293 = vld [vmem:[%s1 + $0x100] sm:$0xff]
  %v294 = vld [vmem:[%s1 + $0x108] sm:$0xff]
  %v295 = vld [vmem:[%s1 + $0x110] sm:$0xff]
  %v296 = vld [vmem:[%s1 + $0x118] sm:$0xff]
  %v297 = vld [vmem:[%s1 + $0x120] sm:$0xff]
  %v298 = vld [vmem:[%s1 + $0x128] sm:$0xff]
  %v299 = vld [vmem:[%s1 + $0x130] sm:$0xff]
  %v300 = vld [vmem:[%s1 + $0x138] sm:$0xff]
  %v301 = vld [vmem:[%s1 + $0x140] sm:$0xff]
  %v302 = vld [vmem:[%s1 + $0x148] sm:$0xff]
  %v303 = vld [vmem:[%s1 + $0x150] sm:$0xff]
  %v304 = vld [vmem:[%s1 + $0x158] sm:$0xff]
  %v305 = vld [vmem:[%s1 + $0x160] sm:$0xff]
  %v306 = vld [vmem:[%s1 + $0x168] sm:$0xff]
  %v307 = vld [vmem:[%s1 + $0x170] sm:$0xff]
  %v308 = vld [vmem:[%s1 + $0x178] sm:$0xff]
  %v309 = vld [vmem:[%s1 + $0x180] sm:$0xff]
  %v310 = vld [vmem:[%s1 + $0x188] sm:$0xff]
  %v311 = vld [vmem:[%s1 + $0x190] sm:$0xff]
  %v312 = vld [vmem:[%s1 + $0x198] sm:$0xff]
  %v313 = vld [vmem:[%s1 + $0x1a0] sm:$0xff]
  %v314 = vld [vmem:[%s1 + $0x1a8] sm:$0xff]
  %v315 = vld [vmem:[%s1 + $0x1b0] sm:$0xff]
  %v316 = vld [vmem:[%s1 + $0x1b8] sm:$0xff]
  %v317 = vld [vmem:[%s1 + $0x1c0] sm:$0xff]
  %v318 = vld [vmem:[%s1 + $0x1c8] sm:$0xff]
  %v319 = vld [vmem:[%s1 + $0x1d0] sm:$0xff]
  %v320 = vld [vmem:[%s1 + $0x1d8] sm:$0xff]
  %v321 = vld [vmem:[%s1 + $0x1e0] sm:$0xff]
  %vm322 = vcmask 850944
  %v324 = vsel %vm322, %v20, 0
  %v327 = vsel %vm322, %v24, 0
  %v330 = vsel %vm322, %v28, 0
  %v333 = vsel %vm322, %v32, 0
  %v336 = vsel %vm322, %v36, 0
  %v339 = vsel %vm322, %v40, 0
  %v342 = vsel %vm322, %v44, 0
  %v345 = vsel %vm322, %v48, 0
  %v348 = vsel %vm322, %v52, 0
  %v351 = vsel %vm322, %v56, 0
  %v354 = vsel %vm322, %v60, 0
  %v357 = vsel %vm322, %v64, 0
  %v360 = vsel %vm322, %v68, 0
  %v363 = vsel %vm322, %v72, 0
  %v366 = vsel %vm322, %v76, 0
  %v369 = vsel %vm322, %v80, 0
  %v372 = vsel %vm322, %v84, 0
  %v375 = vsel %vm322, %v88, 0
  %v378 = vsel %vm322, %v92, 0
  %v381 = vsel %vm322, %v96, 0
  %v384 = vsel %vm322, %v100, 0
  %v387 = vsel %vm322, %v104, 0
  %v390 = vsel %vm322, %v108, 0
  %v393 = vsel %vm322, %v112, 0
  %v396 = vsel %vm322, %v116, 0
  %v399 = vsel %vm322, %v120, 0
  %v402 = vsel %vm322, %v124, 0
  %v405 = vsel %vm322, %v128, 0
  %v408 = vsel %vm322, %v132, 0
  %v411 = vsel %vm322, %v136, 0
  %v414 = vsel %vm322, %v140, 0
  %v417 = vsel %vm322, %v144, 0
  %v420 = vsel %vm322, %v148, 0
  %v423 = vsel %vm322, %v152, 0
  %v426 = vsel %vm322, %v156, 0
  %v429 = vsel %vm322, %v160, 0
  %v432 = vsel %vm322, %v164, 0
  %v435 = vsel %vm322, %v168, 0
  %v438 = vsel %vm322, %v172, 0
  %v441 = vsel %vm322, %v176, 0
  %v444 = vsel %vm322, %v180, 0
  %v447 = vsel %vm322, %v184, 0
  %v450 = vsel %vm322, %v188, 0
  %v453 = vsel %vm322, %v192, 0
  %v456 = vsel %vm322, %v196, 0
  %v459 = vsel %vm322, %v200, 0
  %v462 = vsel %vm322, %v204, 0
  %v465 = vsel %vm322, %v208, 0
  %v468 = vsel %vm322, %v212, 0
  %v471 = vsel %vm322, %v216, 0
  %v474 = vsel %vm322, %v220, 0
  %v477 = vsel %vm322, %v224, 0
  %v480 = vsel %vm322, %v228, 0
  %v483 = vsel %vm322, %v232, 0
  %v486 = vsel %vm322, %v236, 0
  %v489 = vsel %vm322, %v240, 0
  %v492 = vsel %vm322, %v244, 0
  %v495 = vsel %vm322, %v248, 0
  %v498 = vsel %vm322, %v252, 0
  %v501 = vsel %vm322, %v256, 0
  %v504 = vsel %vm322, %v260, 0
  %506 = vmatprep.subr.mxu0 0.0
  %507 = vmatpush1.msra.mxu0 %v261
  %508 = vmatprep.subr.mxu0 0.0
  %509 = vmatpush1.msra.mxu0 %v262
  %510 = vmatprep.subr.mxu0 0.0
  %511 = vmatpush1.msra.mxu0 %v263
  %512 = vmatprep.subr.mxu0 0.0
  %513 = vmatpush1.msra.mxu0 %v264
  %514 = vmatprep.subr.mxu0 0.0
  %515 = vmatpush1.msra.mxu0 %v265
  %516 = vmatprep.subr.mxu0 0.0
  %517 = vmatpush1.msra.mxu0 %v266
  %518 = vmatprep.subr.mxu0 0.0
  %519 = vmatpush1.msra.mxu0 %v267
  %520 = vmatprep.subr.mxu0 0.0
  %521 = vmatpush1.msra.mxu0 %v268
  %522 = vmatprep.subr.mxu0 0.0
  %523 = vmatpush1.msra.mxu0 %v269
  %524 = vmatprep.subr.mxu0 0.0
  %525 = vmatpush1.msra.mxu0 %v270
  %526 = vmatprep.subr.mxu0 0.0
  %527 = vmatpush1.msra.mxu0 %v271
  %528 = vmatprep.subr.mxu0 0.0
  %529 = vmatpush1.msra.mxu0 %v272
  %530 = vmatprep.subr.mxu0 0.0
  %531 = vmatpush1.msra.mxu0 %v273
  %532 = vmatprep.subr.mxu0 0.0
  %533 = vmatpush1.msra.mxu0 %v274
  %534 = vmatprep.subr.mxu0 0.0
  %535 = vmatpush1.msra.mxu0 %v275
  %536 = vmatprep.subr.mxu0 0.0
  %537 = vmatpush1.msra.mxu0 %v276
  %538 = vmatprep.subr.mxu0 0.0
  %539 = vmatpush1.msra.mxu0 %v277
  %540 = vmatprep.subr.mxu0 0.0
  %541 = vmatpush1.msra.mxu0 %v278
  %542 = vmatprep.subr.mxu0 0.0
  %543 = vmatpush1.msra.mxu0 %v279
  %544 = vmatprep.subr.mxu0 0.0
  %545 = vmatpush1.msra.mxu0 %v280
  %546 = vmatprep.subr.mxu0 0.0
  %547 = vmatpush1.msra.mxu0 %v281
  %548 = vmatprep.subr.mxu0 0.0
  %549 = vmatpush1.msra.mxu0 %v282
  %550 = vmatprep.subr.mxu0 0.0
  %551 = vmatpush1.msra.mxu0 %v283
  %552 = vmatprep.subr.mxu0 0.0
  %553 = vmatpush1.msra.mxu0 %v284
  %554 = vmatprep.subr.mxu0 0.0
  %555 = vmatpush1.msra.mxu0 %v285
  %556 = vmatprep.subr.mxu0 0.0
  %557 = vmatpush1.msra.mxu0 %v286
  %558 = vmatprep.subr.mxu0 0.0
  %559 = vmatpush1.msra.mxu0 %v287
  %560 = vmatprep.subr.mxu0 0.0
  %561 = vmatpush1.msra.mxu0 %v288
  %562 = vmatprep.subr.mxu0 0.0
  %563 = vmatpush1.msra.mxu0 %v289
  %564 = vmatprep.subr.mxu0 0.0
  %565 = vmatpush1.msra.mxu0 %v290
  %566 = vmatprep.subr.mxu0 0.0
  %567 = vmatpush1.msra.mxu0 %v291
  %568 = vmatprep.subr.mxu0 0.0
  %569 = vmatpush1.msra.mxu0 %v292
  %570 = vmatprep.mubr.f32.mxu0 %v18
  %571 = vmatmul.mubr.f32.gmra.mrb[0].mxu0 %v17
  %v572 = vpop.f32.mrb[0].mxu0
  %v573 = vadd.f32 0.0, %v572
  %v574 = vpop.f32.mrb[0].mxu0
  %575 = vmatprep.mubr.f32.mxu0 %v22
  %576 = vmatmul.mubr.f32.gmra.mrb[0].mxu0 %v21
  %v577 = vpop.f32.mrb[0].mxu0
  %v578 = vadd.f32 0.0, %v577
  %v579 = vpop.f32.mrb[0].mxu0
  %580 = vmatprep.mubr.f32.mxu0 %v26
  %581 = vmatmul.mubr.f32.gmra.mrb[0].mxu0 %v25
  %v582 = vpop.f32.mrb[0].mxu0
  %v583 = vadd.f32 0.0, %v582
  %v584 = vpop.f32.mrb[0].mxu0
  %585 = vmatprep.mubr.f32.mxu0 %v30
  %586 = vmatmul.mubr.f32.gmra.mrb[0].mxu0 %v29
  %v587 = vpop.f32.mrb[0].mxu0
  %v588 = vadd.f32 0.0, %v587
  %v589 = vpop.f32.mrb[0].mxu0
  %590 = vmatprep.mubr.f32.mxu0 %v34
  %591 = vmatmul.mubr.f32.gmra.mrb[0].mxu0 %v33
  %v592 = vpop.f32.mrb[0].mxu0
  %v593 = vadd.f32 0.0, %v592
  %v594 = vpop.f32.mrb[0].mxu0
  %595 = vmatprep.mubr.f32.mxu0 %v38
  %596 = vmatmul.mubr.f32.gmra.mrb[0].mxu0 %v37
  %v597 = vpop.f32.mrb[0].mxu0
  %v598 = vadd.f32 0.0, %v597
  %v599 = vpop.f32.mrb[0].mxu0
  %600 = vmatprep.mubr.f32.mxu0 %v42
  %601 = vmatmul.mubr.f32.gmra.mrb[0].mxu0 %v41
  %v602 = vpop.f32.mrb[0].mxu0
  %v603 = vadd.f32 0.0, %v602
  %v604 = vpop.f32.mrb[0].mxu0
  %605 = vmatprep.mubr.f32.mxu0 %v46
  %606 = vmatmul.mubr.f32.gmra.mrb[0].mxu0 %v45
  %v607 = vpop.f32.mrb[0].mxu0
  %v608 = vadd.f32 0.0, %v607
  %v609 = vpop.f32.mrb[0].mxu0
  %610 = vmatprep.mubr.f32.mxu0 %v50
  %611 = vmatmul.mubr.f32.gmra.mrb[0].mxu0 %v49
  %v612 = vpop.f32.mrb[0].mxu0
  %v613 = vadd.f32 0.0, %v612
  %v614 = vpop.f32.mrb[0].mxu0
  %615 = vmatprep.mubr.f32.mxu0 %v54
  %616 = vmatmul.mubr.f32.gmra.mrb[0].mxu0 %v53
  %v617 = vpop.f32.mrb[0].mxu0
  %v618 = vadd.f32 0.0, %v617
  %v619 = vpop.f32.mrb[0].mxu0
  %620 = vmatprep.mubr.f32.mxu0 %v58
  %621 = vmatmul.mubr.f32.gmra.mrb[0].mxu0 %v57
  %v622 = vpop.f32.mrb[0].mxu0
  %v623 = vadd.f32 0.0, %v622
  %v624 = vpop.f32.mrb[0].mxu0
  %625 = vmatprep.mubr.f32.mxu0 %v62
  %626 = vmatmul.mubr.f32.gmra.mrb[0].mxu0 %v61
  %v627 = vpop.f32.mrb[0].mxu0
  %v628 = vadd.f32 0.0, %v627
  %v629 = vpop.f32.mrb[0].mxu0
  %630 = vmatprep.mubr.f32.mxu0 %v66
  %631 = vmatmul.mubr.f32.gmra.mrb[0].mxu0 %v65
  %v632 = vpop.f32.mrb[0].mxu0
  %v633 = vadd.f32 0.0, %v632
  %v634 = vpop.f32.mrb[0].mxu0
  %635 = vmatprep.mubr.f32.mxu0 %v70
  %636 = vmatmul.mubr.f32.gmra.mrb[0].mxu0 %v69
  %v637 = vpop.f32.mrb[0].mxu0
  %v638 = vadd.f32 0.0, %v637
  %v639 = vpop.f32.mrb[0].mxu0
  %640 = vmatprep.mubr.f32.mxu0 %v74
  %641 = vmatmul.mubr.f32.gmra.mrb[0].mxu0 %v73
  %v642 = vpop.f32.mrb[0].mxu0
  %v643 = vadd.f32 0.0, %v642
  %v644 = vpop.f32.mrb[0].mxu0
  %645 = vmatprep.mubr.f32.mxu0 %v78
  %646 = vmatmul.mubr.f32.gmra.mrb[0].mxu0 %v77
  %v647 = vpop.f32.mrb[0].mxu0
  %v648 = vadd.f32 0.0, %v647
  %v649 = vpop.f32.mrb[0].mxu0
  %650 = vmatprep.mubr.f32.mxu0 %v82
  %651 = vmatmul.mubr.f32.gmra.mrb[0].mxu0 %v81
  %v652 = vpop.f32.mrb[0].mxu0
  %v653 = vadd.f32 0.0, %v652
  %v654 = vpop.f32.mrb[0].mxu0
  %655 = vmatprep.mubr.f32.mxu0 %v86
  %656 = vmatmul.mubr.f32.gmra.mrb[0].mxu0 %v85
  %v657 = vpop.f32.mrb[0].mxu0
  %v658 = vadd.f32 0.0, %v657
  %v659 = vpop.f32.mrb[0].mxu0
  %660 = vmatprep.mubr.f32.mxu0 %v90
  %661 = vmatmul.mubr.f32.gmra.mrb[0].mxu0 %v89
  %v662 = vpop.f32.mrb[0].mxu0
  %v663 = vadd.f32 0.0, %v662
  %v664 = vpop.f32.mrb[0].mxu0
  %665 = vmatprep.mubr.f32.mxu0 %v94
  %666 = vmatmul.mubr.f32.gmra.mrb[0].mxu0 %v93
  %v667 = vpop.f32.mrb[0].mxu0
  %v668 = vadd.f32 0.0, %v667
  %v669 = vpop.f32.mrb[0].mxu0
  %670 = vmatprep.mubr.f32.mxu0 %v98
  %671 = vmatmul.mubr.f32.gmra.mrb[0].mxu0 %v97
  %v672 = vpop.f32.mrb[0].mxu0
  %v673 = vadd.f32 0.0, %v672
  %v674 = vpop.f32.mrb[0].mxu0
  %675 = vmatprep.mubr.f32.mxu0 %v102
  %676 = vmatmul.mubr.f32.gmra.mrb[0].mxu0 %v101
  %v677 = vpop.f32.mrb[0].mxu0
  %v678 = vadd.f32 0.0, %v677
  %v679 = vpop.f32.mrb[0].mxu0
  %680 = vmatprep.mubr.f32.mxu0 %v106
  %681 = vmatmul.mubr.f32.gmra.mrb[0].mxu0 %v105
  %v682 = vpop.f32.mrb[0].mxu0
  %v683 = vadd.f32 0.0, %v682
  %v684 = vpop.f32.mrb[0].mxu0
  %685 = vmatprep.mubr.f32.mxu0 %v110
  %686 = vmatmul.mubr.f32.gmra.mrb[0].mxu0 %v109
  %v687 = vpop.f32.mrb[0].mxu0
  %v688 = vadd.f32 0.0, %v687
  %v689 = vpop.f32.mrb[0].mxu0
  %690 = vmatprep.mubr.f32.mxu0 %v114
  %691 = vmatmul.mubr.f32.gmra.mrb[0].mxu0 %v113
  %v692 = vpop.f32.mrb[0].mxu0
  %v693 = vadd.f32 0.0, %v692
  %v694 = vpop.f32.mrb[0].mxu0
  %695 = vmatprep.mubr.f32.mxu0 %v118
  %696 = vmatmul.mubr.f32.gmra.mrb[0].mxu0 %v117
  %v697 = vpop.f32.mrb[0].mxu0
  %v698 = vadd.f32 0.0, %v697
  %v699 = vpop.f32.mrb[0].mxu0
  %700 = vmatprep.mubr.f32.mxu0 %v122
  %701 = vmatmul.mubr.f32.gmra.mrb[0].mxu0 %v121
  %v702 = vpop.f32.mrb[0].mxu0
  %v703 = vadd.f32 0.0, %v702
  %v704 = vpop.f32.mrb[0].mxu0
  %705 = vmatprep.mubr.f32.mxu0 %v126
  %706 = vmatmul.mubr.f32.gmra.mrb[0].mxu0 %v125
  %v707 = vpop.f32.mrb[0].mxu0
  %v708 = vadd.f32 0.0, %v707
  %v709 = vpop.f32.mrb[0].mxu0
  %710 = vmatprep.mubr.f32.mxu0 %v130
  %711 = vmatmul.mubr.f32.gmra.mrb[0].mxu0 %v129
  %v712 = vpop.f32.mrb[0].mxu0
  %v713 = vadd.f32 0.0, %v712
  %v714 = vpop.f32.mrb[0].mxu0
  %715 = vmatprep.mubr.f32.mxu0 %v134
  %716 = vmatmul.mubr.f32.gmra.mrb[0].mxu0 %v133
  %v717 = vpop.f32.mrb[0].mxu0
  %v718 = vadd.f32 0.0, %v717
  %v719 = vpop.f32.mrb[0].mxu0
  %720 = vmatprep.mubr.f32.mxu0 %v138
  %721 = vmatmul.mubr.f32.gmra.mrb[0].mxu0 %v137
  %v722 = vpop.f32.mrb[0].mxu0
  %v723 = vadd.f32 0.0, %v722
  %v724 = vpop.f32.mrb[0].mxu0
  %725 = vmatprep.mubr.f32.mxu0 %v142
  %726 = vmatmul.mubr.f32.gmra.mrb[0].mxu0 %v141
  %v727 = vpop.f32.mrb[0].mxu0
  %v728 = vadd.f32 0.0, %v727
  %v729 = vpop.f32.mrb[0].mxu0
  %730 = vmatprep.mubr.f32.mxu0 %v146
  %731 = vmatmul.mubr.f32.gmra.mrb[0].mxu0 %v145
  %v732 = vpop.f32.mrb[0].mxu0
  %v733 = vadd.f32 0.0, %v732
  %v734 = vpop.f32.mrb[0].mxu0
  %735 = vmatprep.mubr.f32.mxu0 %v150
  %736 = vmatmul.mubr.f32.gmra.mrb[0].mxu0 %v149
  %v737 = vpop.f32.mrb[0].mxu0
  %v738 = vadd.f32 0.0, %v737
  %v739 = vpop.f32.mrb[0].mxu0
  %740 = vmatprep.mubr.f32.mxu0 %v154
  %741 = vmatmul.mubr.f32.gmra.mrb[0].mxu0 %v153
  %v742 = vpop.f32.mrb[0].mxu0
  %v743 = vadd.f32 0.0, %v742
  %v744 = vpop.f32.mrb[0].mxu0
  %745 = vmatprep.mubr.f32.mxu0 %v158
  %746 = vmatmul.mubr.f32.gmra.mrb[0].mxu0 %v157
  %v747 = vpop.f32.mrb[0].mxu0
  %v748 = vadd.f32 0.0, %v747
  %v749 = vpop.f32.mrb[0].mxu0
  %750 = vmatprep.mubr.f32.mxu0 %v162
  %751 = vmatmul.mubr.f32.gmra.mrb[0].mxu0 %v161
  %v752 = vpop.f32.mrb[0].mxu0
  %v753 = vadd.f32 0.0, %v752
  %v754 = vpop.f32.mrb[0].mxu0
  %755 = vmatprep.mubr.f32.mxu0 %v166
  %756 = vmatmul.mubr.f32.gmra.mrb[0].mxu0 %v165
  %v757 = vpop.f32.mrb[0].mxu0
  %v758 = vadd.f32 0.0, %v757
  %v759 = vpop.f32.mrb[0].mxu0
  %760 = vmatprep.mubr.f32.mxu0 %v170
  %761 = vmatmul.mubr.f32.gmra.mrb[0].mxu0 %v169
  %v762 = vpop.f32.mrb[0].mxu0
  %v763 = vadd.f32 0.0, %v762
  %v764 = vpop.f32.mrb[0].mxu0
  %765 = vmatprep.mubr.f32.mxu0 %v174
  %766 = vmatmul.mubr.f32.gmra.mrb[0].mxu0 %v173
  %v767 = vpop.f32.mrb[0].mxu0
  %v768 = vadd.f32 0.0, %v767
  %v769 = vpop.f32.mrb[0].mxu0
  %770 = vmatprep.mubr.f32.mxu0 %v178
  %771 = vmatmul.mubr.f32.gmra.mrb[0].mxu0 %v177
  %v772 = vpop.f32.mrb[0].mxu0
  %v773 = vadd.f32 0.0, %v772
  %v774 = vpop.f32.mrb[0].mxu0
  %775 = vmatprep.mubr.f32.mxu0 %v182
  %776 = vmatmul.mubr.f32.gmra.mrb[0].mxu0 %v181
  %v777 = vpop.f32.mrb[0].mxu0
  %v778 = vadd.f32 0.0, %v777
  %v779 = vpop.f32.mrb[0].mxu0
  %780 = vmatprep.mubr.f32.mxu0 %v186
  %781 = vmatmul.mubr.f32.gmra.mrb[0].mxu0 %v185
  %v782 = vpop.f32.mrb[0].mxu0
  %v783 = vadd.f32 0.0, %v782
  %v784 = vpop.f32.mrb[0].mxu0
  %785 = vmatprep.mubr.f32.mxu0 %v190
  %786 = vmatmul.mubr.f32.gmra.mrb[0].mxu0 %v189
  %v787 = vpop.f32.mrb[0].mxu0
  %v788 = vadd.f32 0.0, %v787
  %v789 = vpop.f32.mrb[0].mxu0
  %790 = vmatprep.mubr.f32.mxu0 %v194
  %791 = vmatmul.mubr.f32.gmra.mrb[0].mxu0 %v193
  %v792 = vpop.f32.mrb[0].mxu0
  %v793 = vadd.f32 0.0, %v792
  %v794 = vpop.f32.mrb[0].mxu0
  %795 = vmatprep.mubr.f32.mxu0 %v198
  %796 = vmatmul.mubr.f32.gmra.mrb[0].mxu0 %v197
  %v797 = vpop.f32.mrb[0].mxu0
  %v798 = vadd.f32 0.0, %v797
  %v799 = vpop.f32.mrb[0].mxu0
  %800 = vmatprep.mubr.f32.mxu0 %v202
  %801 = vmatmul.mubr.f32.gmra.mrb[0].mxu0 %v201
  %v802 = vpop.f32.mrb[0].mxu0
  %v803 = vadd.f32 0.0, %v802
  %v804 = vpop.f32.mrb[0].mxu0
  %805 = vmatprep.mubr.f32.mxu0 %v206
  %806 = vmatmul.mubr.f32.gmra.mrb[0].mxu0 %v205
  %v807 = vpop.f32.mrb[0].mxu0
  %v808 = vadd.f32 0.0, %v807
  %v809 = vpop.f32.mrb[0].mxu0
  %810 = vmatprep.mubr.f32.mxu0 %v210
  %811 = vmatmul.mubr.f32.gmra.mrb[0].mxu0 %v209
  %v812 = vpop.f32.mrb[0].mxu0
  %v813 = vadd.f32 0.0, %v812
  %v814 = vpop.f32.mrb[0].mxu0
  %815 = vmatprep.mubr.f32.mxu0 %v214
  %816 = vmatmul.mubr.f32.gmra.mrb[0].mxu0 %v213
  %v817 = vpop.f32.mrb[0].mxu0
  %v818 = vadd.f32 0.0, %v817
  %v819 = vpop.f32.mrb[0].mxu0
  %820 = vmatprep.mubr.f32.mxu0 %v218
  %821 = vmatmul.mubr.f32.gmra.mrb[0].mxu0 %v217
  %v822 = vpop.f32.mrb[0].mxu0
  %v823 = vadd.f32 0.0, %v822
  %v824 = vpop.f32.mrb[0].mxu0
  %825 = vmatprep.mubr.f32.mxu0 %v222
  %826 = vmatmul.mubr.f32.gmra.mrb[0].mxu0 %v221
  %v827 = vpop.f32.mrb[0].mxu0
  %v828 = vadd.f32 0.0, %v827
  %v829 = vpop.f32.mrb[0].mxu0
  %830 = vmatprep.mubr.f32.mxu0 %v226
  %831 = vmatmul.mubr.f32.gmra.mrb[0].mxu0 %v225
  %v832 = vpop.f32.mrb[0].mxu0
  %v833 = vadd.f32 0.0, %v832
  %v834 = vpop.f32.mrb[0].mxu0
  %835 = vmatprep.mubr.f32.mxu0 %v230
  %836 = vmatmul.mubr.f32.gmra.mrb[0].mxu0 %v229
  %v837 = vpop.f32.mrb[0].mxu0
  %v838 = vadd.f32 0.0, %v837
  %v839 = vpop.f32.mrb[0].mxu0
  %840 = vmatprep.mubr.f32.mxu0 %v234
  %841 = vmatmul.mubr.f32.gmra.mrb[0].mxu0 %v233
  %v842 = vpop.f32.mrb[0].mxu0
  %v843 = vadd.f32 0.0, %v842
  %v844 = vpop.f32.mrb[0].mxu0
  %845 = vmatprep.mubr.f32.mxu0 %v238
  %846 = vmatmul.mubr.f32.gmra.mrb[0].mxu0 %v237
  %v847 = vpop.f32.mrb[0].mxu0
  %v848 = vadd.f32 0.0, %v847
  %v849 = vpop.f32.mrb[0].mxu0
  %850 = vmatprep.mubr.f32.mxu0 %v242
  %851 = vmatmul.mubr.f32.gmra.mrb[0].mxu0 %v241
  %v852 = vpop.f32.mrb[0].mxu0
  %v853 = vadd.f32 0.0, %v852
  %v854 = vpop.f32.mrb[0].mxu0
  %855 = vmatprep.mubr.f32.mxu0 %v246
  %856 = vmatmul.mubr.f32.gmra.mrb[0].mxu0 %v245
  %v857 = vpop.f32.mrb[0].mxu0
  %v858 = vadd.f32 0.0, %v857
  %v859 = vpop.f32.mrb[0].mxu0
  %860 = vmatprep.mubr.f32.mxu0 %v250
  %861 = vmatmul.mubr.f32.gmra.mrb[0].mxu0 %v249
  %v862 = vpop.f32.mrb[0].mxu0
  %v863 = vadd.f32 0.0, %v862
  %v864 = vpop.f32.mrb[0].mxu0
  %865 = vmatprep.mubr.f32.mxu0 %v254
  %866 = vmatmul.mubr.f32.gmra.mrb[0].mxu0 %v253
  %v867 = vpop.f32.mrb[0].mxu0
  %v868 = vadd.f32 0.0, %v867
  %v869 = vpop.f32.mrb[0].mxu0
  %870 = vmatprep.mubr.f32.mxu0 %v258
  %871 = vmatmul.mubr.f32.gmra.mrb[0].mxu0 %v257
  %v872 = vpop.f32.mrb[0].mxu0
  %v873 = vadd.f32 0.0, %v872
  %v874 = vpop.f32.mrb[0].mxu0
  %875 = vdwg.mxu0
  %876 = vmatprep.subr.mxu0 0.0
  %877 = vmatpush1.msra.mxu0 %v293
  %878 = vmatprep.subr.mxu0 0.0
  %879 = vmatpush1.msra.mxu0 %v294
  %880 = vmatprep.subr.mxu0 0.0
  %881 = vmatpush1.msra.mxu0 %v295
  %882 = vmatprep.subr.mxu0 0.0
  %883 = vmatpush1.msra.mxu0 %v296
  %884 = vmatprep.subr.mxu0 0.0
  %885 = vmatpush1.msra.mxu0 %v297
  %886 = vmatprep.subr.mxu0 0.0
  %887 = vmatpush1.msra.mxu0 %v298
  %888 = vmatprep.subr.mxu0 0.0
  %889 = vmatpush1.msra.mxu0 %v299
  %890 = vmatprep.subr.mxu0 0.0
  %891 = vmatpush1.msra.mxu0 %v300
  %892 = vmatprep.subr.mxu0 0.0
  %893 = vmatpush1.msra.mxu0 %v301
  %894 = vmatprep.subr.mxu0 0.0
  %895 = vmatpush1.msra.mxu0 %v302
  %896 = vmatprep.subr.mxu0 0.0
  %897 = vmatpush1.msra.mxu0 %v303
  %898 = vmatprep.subr.mxu0 0.0
  %899 = vmatpush1.msra.mxu0 %v304
  %900 = vmatprep.subr.mxu0 0.0
  %901 = vmatpush1.msra.mxu0 %v305
  %902 = vmatprep.subr.mxu0 0.0
  %903 = vmatpush1.msra.mxu0 %v306
  %904 = vmatprep.subr.mxu0 0.0
  %905 = vmatpush1.msra.mxu0 %v307
  %906 = vmatprep.subr.mxu0 0.0
  %907 = vmatpush1.msra.mxu0 %v308
  %908 = vmatprep.subr.mxu0 0.0
  %909 = vmatpush1.msra.mxu0 %v309
  %910 = vmatprep.subr.mxu0 0.0
  %911 = vmatpush1.msra.mxu0 %v310
  %912 = vmatprep.subr.mxu0 0.0
  %913 = vmatpush1.msra.mxu0 %v311
  %914 = vmatprep.subr.mxu0 0.0
  %915 = vmatpush1.msra.mxu0 %v312
  %916 = vmatprep.subr.mxu0 0.0
  %917 = vmatpush1.msra.mxu0 %v313
  %918 = vmatprep.subr.mxu0 0.0
  %919 = vmatpush1.msra.mxu0 %v314
  %920 = vmatprep.subr.mxu0 0.0
  %921 = vmatpush1.msra.mxu0 %v315
  %922 = vmatprep.subr.mxu0 0.0
  %923 = vmatpush1.msra.mxu0 %v316
  %924 = vmatprep.subr.mxu0 0.0
  %925 = vmatpush1.msra.mxu0 %v317
  %926 = vmatprep.subr.mxu0 0.0
  %927 = vmatpush1.msra.mxu0 %v318
  %928 = vmatprep.subr.mxu0 0.0
  %929 = vmatpush1.msra.mxu0 %v319
  %930 = vmatprep.subr.mxu0 0.0
  %931 = vmatpush1.msra.mxu0 %v320
  %932 = vmatprep.subr.mxu0 0.0
  %933 = vmatpush1.msra.mxu0 %v321
  %934 = vmatprep.subr.mxu0 0.0
  %935 = vmatpush1.msra.mxu0 0.0
  %936 = vmatprep.subr.mxu0 0.0
  %937 = vmatpush1.msra.mxu0 0.0
  %938 = vmatprep.subr.mxu0 0.0
  %939 = vmatpush1.msra.mxu0 0.0
  %940 = vmatprep.mubr.f32.mxu0 %v324
  %941 = vmatmul.mubr.f32.gmra.mrb[0].mxu0 %v19
  %v942 = vpop.f32.mrb[0].mxu0
  %v943 = vadd.f32 %v573, %v942
  %v944 = vpop.f32.mrb[0].mxu0
  %945 = vmatprep.mubr.f32.mxu0 %v327
  %946 = vmatmul.mubr.f32.gmra.mrb[0].mxu0 %v23
  %v947 = vpop.f32.mrb[0].mxu0
  %v948 = vadd.f32 %v578, %v947
  %v949 = vpop.f32.mrb[0].mxu0
  %950 = vmatprep.mubr.f32.mxu0 %v330
  %951 = vmatmul.mubr.f32.gmra.mrb[0].mxu0 %v27
  %v952 = vpop.f32.mrb[0].mxu0
  %v953 = vadd.f32 %v583, %v952
  %v954 = vpop.f32.mrb[0].mxu0
  %955 = vmatprep.mubr.f32.mxu0 %v333
  %956 = vmatmul.mubr.f32.gmra.mrb[0].mxu0 %v31
  %v957 = vpop.f32.mrb[0].mxu0
  %v958 = vadd.f32 %v588, %v957
  %v959 = vpop.f32.mrb[0].mxu0
  %960 = vmatprep.mubr.f32.mxu0 %v336
  %961 = vmatmul.mubr.f32.gmra.mrb[0].mxu0 %v35
  %v962 = vpop.f32.mrb[0].mxu0
  %v963 = vadd.f32 %v593, %v962
  %v964 = vpop.f32.mrb[0].mxu0
  %965 = vmatprep.mubr.f32.mxu0 %v339
  %966 = vmatmul.mubr.f32.gmra.mrb[0].mxu0 %v39
  %v967 = vpop.f32.mrb[0].mxu0
  %v968 = vadd.f32 %v598, %v967
  %v969 = vpop.f32.mrb[0].mxu0
  %970 = vmatprep.mubr.f32.mxu0 %v342
  %971 = vmatmul.mubr.f32.gmra.mrb[0].mxu0 %v43
  %v972 = vpop.f32.mrb[0].mxu0
  %v973 = vadd.f32 %v603, %v972
  %v974 = vpop.f32.mrb[0].mxu0
  %975 = vmatprep.mubr.f32.mxu0 %v345
  %976 = vmatmul.mubr.f32.gmra.mrb[0].mxu0 %v47
  %v977 = vpop.f32.mrb[0].mxu0
  %v978 = vadd.f32 %v608, %v977
  %v979 = vpop.f32.mrb[0].mxu0
  %980 = vmatprep.mubr.f32.mxu0 %v348
  %981 = vmatmul.mubr.f32.gmra.mrb[0].mxu0 %v51
  %v982 = vpop.f32.mrb[0].mxu0
  %v983 = vadd.f32 %v613, %v982
  %v984 = vpop.f32.mrb[0].mxu0
  %985 = vmatprep.mubr.f32.mxu0 %v351
  %986 = vmatmul.mubr.f32.gmra.mrb[0].mxu0 %v55
  %v987 = vpop.f32.mrb[0].mxu0
  %v988 = vadd.f32 %v618, %v987
  %v989 = vpop.f32.mrb[0].mxu0
  %990 = vmatprep.mubr.f32.mxu0 %v354
  %991 = vmatmul.mubr.f32.gmra.mrb[0].mxu0 %v59
  %v992 = vpop.f32.mrb[0].mxu0
  %v993 = vadd.f32 %v623, %v992
  %v994 = vpop.f32.mrb[0].mxu0
  %995 = vmatprep.mubr.f32.mxu0 %v357
  %996 = vmatmul.mubr.f32.gmra.mrb[0].mxu0 %v63
  %v997 = vpop.f32.mrb[0].mxu0
  %v998 = vadd.f32 %v628, %v997
  %v999 = vpop.f32.mrb[0].mxu0
  %1000 = vmatprep.mubr.f32.mxu0 %v360
  %1001 = vmatmul.mubr.f32.gmra.mrb[0].mxu0 %v67
  %v1002 = vpop.f32.mrb[0].mxu0
  %v1003 = vadd.f32 %v633, %v1002
  %v1004 = vpop.f32.mrb[0].mxu0
  %1005 = vmatprep.mubr.f32.mxu0 %v363
  %1006 = vmatmul.mubr.f32.gmra.mrb[0].mxu0 %v71
  %v1007 = vpop.f32.mrb[0].mxu0
  %v1008 = vadd.f32 %v638, %v1007
  %v1009 = vpop.f32.mrb[0].mxu0
  %1010 = vmatprep.mubr.f32.mxu0 %v366
  %1011 = vmatmul.mubr.f32.gmra.mrb[0].mxu0 %v75
  %v1012 = vpop.f32.mrb[0].mxu0
  %v1013 = vadd.f32 %v643, %v1012
  %v1014 = vpop.f32.mrb[0].mxu0
  %1015 = vmatprep.mubr.f32.mxu0 %v369
  %1016 = vmatmul.mubr.f32.gmra.mrb[0].mxu0 %v79
  %v1017 = vpop.f32.mrb[0].mxu0
  %v1018 = vadd.f32 %v648, %v1017
  %v1019 = vpop.f32.mrb[0].mxu0
  %1020 = vmatprep.mubr.f32.mxu0 %v372
  %1021 = vmatmul.mubr.f32.gmra.mrb[0].mxu0 %v83
  %v1022 = vpop.f32.mrb[0].mxu0
  %v1023 = vadd.f32 %v653, %v1022
  %v1024 = vpop.f32.mrb[0].mxu0
  %1025 = vmatprep.mubr.f32.mxu0 %v375
  %1026 = vmatmul.mubr.f32.gmra.mrb[0].mxu0 %v87
  %v1027 = vpop.f32.mrb[0].mxu0
  %v1028 = vadd.f32 %v658, %v1027
  %v1029 = vpop.f32.mrb[0].mxu0
  %1030 = vmatprep.mubr.f32.mxu0 %v378
  %1031 = vmatmul.mubr.f32.gmra.mrb[0].mxu0 %v91
  %v1032 = vpop.f32.mrb[0].mxu0
  %v1033 = vadd.f32 %v663, %v1032
  %v1034 = vpop.f32.mrb[0].mxu0
  %1035 = vmatprep.mubr.f32.mxu0 %v381
  %1036 = vmatmul.mubr.f32.gmra.mrb[0].mxu0 %v95
  %v1037 = vpop.f32.mrb[0].mxu0
  %v1038 = vadd.f32 %v668, %v1037
  %v1039 = vpop.f32.mrb[0].mxu0
  %1040 = vmatprep.mubr.f32.mxu0 %v384
  %1041 = vmatmul.mubr.f32.gmra.mrb[0].mxu0 %v99
  %v1042 = vpop.f32.mrb[0].mxu0
  %v1043 = vadd.f32 %v673, %v1042
  %v1044 = vpop.f32.mrb[0].mxu0
  %1045 = vmatprep.mubr.f32.mxu0 %v387
  %1046 = vmatmul.mubr.f32.gmra.mrb[0].mxu0 %v103
  %v1047 = vpop.f32.mrb[0].mxu0
  %v1048 = vadd.f32 %v678, %v1047
  %v1049 = vpop.f32.mrb[0].mxu0
  %1050 = vmatprep.mubr.f32.mxu0 %v390
  %1051 = vmatmul.mubr.f32.gmra.mrb[0].mxu0 %v107
  %v1052 = vpop.f32.mrb[0].mxu0
  %v1053 = vadd.f32 %v683, %v1052
  %v1054 = vpop.f32.mrb[0].mxu0
  %1055 = vmatprep.mubr.f32.mxu0 %v393
  %1056 = vmatmul.mubr.f32.gmra.mrb[0].mxu0 %v111
  %v1057 = vpop.f32.mrb[0].mxu0
  %v1058 = vadd.f32 %v688, %v1057
  %v1059 = vpop.f32.mrb[0].mxu0
  %1060 = vmatprep.mubr.f32.mxu0 %v396
  %1061 = vmatmul.mubr.f32.gmra.mrb[0].mxu0 %v115
  %v1062 = vpop.f32.mrb[0].mxu0
  %v1063 = vadd.f32 %v693, %v1062
  %v1064 = vpop.f32.mrb[0].mxu0
  %1065 = vmatprep.mubr.f32.mxu0 %v399
  %1066 = vmatmul.mubr.f32.gmra.mrb[0].mxu0 %v119
  %v1067 = vpop.f32.mrb[0].mxu0
  %v1068 = vadd.f32 %v698, %v1067
  %v1069 = vpop.f32.mrb[0].mxu0
  %1070 = vmatprep.mubr.f32.mxu0 %v402
  %1071 = vmatmul.mubr.f32.gmra.mrb[0].mxu0 %v123
  %v1072 = vpop.f32.mrb[0].mxu0
  %v1073 = vadd.f32 %v703, %v1072
  %v1074 = vpop.f32.mrb[0].mxu0
  %1075 = vmatprep.mubr.f32.mxu0 %v405
  %1076 = vmatmul.mubr.f32.gmra.mrb[0].mxu0 %v127
  %v1077 = vpop.f32.mrb[0].mxu0
  %v1078 = vadd.f32 %v708, %v1077
  %v1079 = vpop.f32.mrb[0].mxu0
  %1080 = vmatprep.mubr.f32.mxu0 %v408
  %1081 = vmatmul.mubr.f32.gmra.mrb[0].mxu0 %v131
  %v1082 = vpop.f32.mrb[0].mxu0
  %v1083 = vadd.f32 %v713, %v1082
  %v1084 = vpop.f32.mrb[0].mxu0
  %1085 = vmatprep.mubr.f32.mxu0 %v411
  %1086 = vmatmul.mubr.f32.gmra.mrb[0].mxu0 %v135
  %v1087 = vpop.f32.mrb[0].mxu0
  %v1088 = vadd.f32 %v718, %v1087
  %v1089 = vpop.f32.mrb[0].mxu0
  %1090 = vmatprep.mubr.f32.mxu0 %v414
  %1091 = vmatmul.mubr.f32.gmra.mrb[0].mxu0 %v139
  %v1092 = vpop.f32.mrb[0].mxu0
  %v1093 = vadd.f32 %v723, %v1092
  %v1094 = vpop.f32.mrb[0].mxu0
  %1095 = vmatprep.mubr.f32.mxu0 %v417
  %1096 = vmatmul.mubr.f32.gmra.mrb[0].mxu0 %v143
  %v1097 = vpop.f32.mrb[0].mxu0
  %v1098 = vadd.f32 %v728, %v1097
  %v1099 = vpop.f32.mrb[0].mxu0
  %1100 = vmatprep.mubr.f32.mxu0 %v420
  %1101 = vmatmul.mubr.f32.gmra.mrb[0].mxu0 %v147
  %v1102 = vpop.f32.mrb[0].mxu0
  %v1103 = vadd.f32 %v733, %v1102
  %v1104 = vpop.f32.mrb[0].mxu0
  %1105 = vmatprep.mubr.f32.mxu0 %v423
  %1106 = vmatmul.mubr.f32.gmra.mrb[0].mxu0 %v151
  %v1107 = vpop.f32.mrb[0].mxu0
  %v1108 = vadd.f32 %v738, %v1107
  %v1109 = vpop.f32.mrb[0].mxu0
  %1110 = vmatprep.mubr.f32.mxu0 %v426
  %1111 = vmatmul.mubr.f32.gmra.mrb[0].mxu0 %v155
  %v1112 = vpop.f32.mrb[0].mxu0
  %v1113 = vadd.f32 %v743, %v1112
  %v1114 = vpop.f32.mrb[0].mxu0
  %1115 = vmatprep.mubr.f32.mxu0 %v429
  %1116 = vmatmul.mubr.f32.gmra.mrb[0].mxu0 %v159
  %v1117 = vpop.f32.mrb[0].mxu0
  %v1118 = vadd.f32 %v748, %v1117
  %v1119 = vpop.f32.mrb[0].mxu0
  %1120 = vmatprep.mubr.f32.mxu0 %v432
  %1121 = vmatmul.mubr.f32.gmra.mrb[0].mxu0 %v163
  %v1122 = vpop.f32.mrb[0].mxu0
  %v1123 = vadd.f32 %v753, %v1122
  %v1124 = vpop.f32.mrb[0].mxu0
  %1125 = vmatprep.mubr.f32.mxu0 %v435
  %1126 = vmatmul.mubr.f32.gmra.mrb[0].mxu0 %v167
  %v1127 = vpop.f32.mrb[0].mxu0
  %v1128 = vadd.f32 %v758, %v1127
  %v1129 = vpop.f32.mrb[0].mxu0
  %1130 = vmatprep.mubr.f32.mxu0 %v438
  %1131 = vmatmul.mubr.f32.gmra.mrb[0].mxu0 %v171
  %v1132 = vpop.f32.mrb[0].mxu0
  %v1133 = vadd.f32 %v763, %v1132
  %v1134 = vpop.f32.mrb[0].mxu0
  %1135 = vmatprep.mubr.f32.mxu0 %v441
  %1136 = vmatmul.mubr.f32.gmra.mrb[0].mxu0 %v175
  %v1137 = vpop.f32.mrb[0].mxu0
  %v1138 = vadd.f32 %v768, %v1137
  %v1139 = vpop.f32.mrb[0].mxu0
  %1140 = vmatprep.mubr.f32.mxu0 %v444
  %1141 = vmatmul.mubr.f32.gmra.mrb[0].mxu0 %v179
  %v1142 = vpop.f32.mrb[0].mxu0
  %v1143 = vadd.f32 %v773, %v1142
  %v1144 = vpop.f32.mrb[0].mxu0
  %1145 = vmatprep.mubr.f32.mxu0 %v447
  %1146 = vmatmul.mubr.f32.gmra.mrb[0].mxu0 %v183
  %v1147 = vpop.f32.mrb[0].mxu0
  %v1148 = vadd.f32 %v778, %v1147
  %v1149 = vpop.f32.mrb[0].mxu0
  %1150 = vmatprep.mubr.f32.mxu0 %v450
  %1151 = vmatmul.mubr.f32.gmra.mrb[0].mxu0 %v187
  %v1152 = vpop.f32.mrb[0].mxu0
  %v1153 = vadd.f32 %v783, %v1152
  %v1154 = vpop.f32.mrb[0].mxu0
  %1155 = vmatprep.mubr.f32.mxu0 %v453
  %1156 = vmatmul.mubr.f32.gmra.mrb[0].mxu0 %v191
  %v1157 = vpop.f32.mrb[0].mxu0
  %v1158 = vadd.f32 %v788, %v1157
  %v1159 = vpop.f32.mrb[0].mxu0
  %1160 = vmatprep.mubr.f32.mxu0 %v456
  %1161 = vmatmul.mubr.f32.gmra.mrb[0].mxu0 %v195
  %v1162 = vpop.f32.mrb[0].mxu0
  %v1163 = vadd.f32 %v793, %v1162
  %v1164 = vpop.f32.mrb[0].mxu0
  %1165 = vmatprep.mubr.f32.mxu0 %v459
  %1166 = vmatmul.mubr.f32.gmra.mrb[0].mxu0 %v199
  %v1167 = vpop.f32.mrb[0].mxu0
  %v1168 = vadd.f32 %v798, %v1167
  %v1169 = vpop.f32.mrb[0].mxu0
  %1170 = vmatprep.mubr.f32.mxu0 %v462
  %1171 = vmatmul.mubr.f32.gmra.mrb[0].mxu0 %v203
  %v1172 = vpop.f32.mrb[0].mxu0
  %v1173 = vadd.f32 %v803, %v1172
  %v1174 = vpop.f32.mrb[0].mxu0
  %1175 = vmatprep.mubr.f32.mxu0 %v465
  %1176 = vmatmul.mubr.f32.gmra.mrb[0].mxu0 %v207
  %v1177 = vpop.f32.mrb[0].mxu0
  %v1178 = vadd.f32 %v808, %v1177
  %v1179 = vpop.f32.mrb[0].mxu0
  %1180 = vmatprep.mubr.f32.mxu0 %v468
  %1181 = vmatmul.mubr.f32.gmra.mrb[0].mxu0 %v211
  %v1182 = vpop.f32.mrb[0].mxu0
  %v1183 = vadd.f32 %v813, %v1182
  %v1184 = vpop.f32.mrb[0].mxu0
  %1185 = vmatprep.mubr.f32.mxu0 %v471
  %1186 = vmatmul.mubr.f32.gmra.mrb[0].mxu0 %v215
  %v1187 = vpop.f32.mrb[0].mxu0
  %v1188 = vadd.f32 %v818, %v1187
  %v1189 = vpop.f32.mrb[0].mxu0
  %1190 = vmatprep.mubr.f32.mxu0 %v474
  %1191 = vmatmul.mubr.f32.gmra.mrb[0].mxu0 %v219
  %v1192 = vpop.f32.mrb[0].mxu0
  %v1193 = vadd.f32 %v823, %v1192
  %v1194 = vpop.f32.mrb[0].mxu0
  %1195 = vmatprep.mubr.f32.mxu0 %v477
  %1196 = vmatmul.mubr.f32.gmra.mrb[0].mxu0 %v223
  %v1197 = vpop.f32.mrb[0].mxu0
  %v1198 = vadd.f32 %v828, %v1197
  %v1199 = vpop.f32.mrb[0].mxu0
  %1200 = vmatprep.mubr.f32.mxu0 %v480
  %1201 = vmatmul.mubr.f32.gmra.mrb[0].mxu0 %v227
  %v1202 = vpop.f32.mrb[0].mxu0
  %v1203 = vadd.f32 %v833, %v1202
  %v1204 = vpop.f32.mrb[0].mxu0
  %1205 = vmatprep.mubr.f32.mxu0 %v483
  %1206 = vmatmul.mubr.f32.gmra.mrb[0].mxu0 %v231
  %v1207 = vpop.f32.mrb[0].mxu0
  %v1208 = vadd.f32 %v838, %v1207
  %v1209 = vpop.f32.mrb[0].mxu0
  %1210 = vmatprep.mubr.f32.mxu0 %v486
  %1211 = vmatmul.mubr.f32.gmra.mrb[0].mxu0 %v235
  %v1212 = vpop.f32.mrb[0].mxu0
  %v1213 = vadd.f32 %v843, %v1212
  %v1214 = vpop.f32.mrb[0].mxu0
  %1215 = vmatprep.mubr.f32.mxu0 %v489
  %1216 = vmatmul.mubr.f32.gmra.mrb[0].mxu0 %v239
  %v1217 = vpop.f32.mrb[0].mxu0
  %v1218 = vadd.f32 %v848, %v1217
  %v1219 = vpop.f32.mrb[0].mxu0
  %1220 = vmatprep.mubr.f32.mxu0 %v492
  %1221 = vmatmul.mubr.f32.gmra.mrb[0].mxu0 %v243
  %v1222 = vpop.f32.mrb[0].mxu0
  %v1223 = vadd.f32 %v853, %v1222
  %v1224 = vpop.f32.mrb[0].mxu0
  %1225 = vmatprep.mubr.f32.mxu0 %v495
  %1226 = vmatmul.mubr.f32.gmra.mrb[0].mxu0 %v247
  %v1227 = vpop.f32.mrb[0].mxu0
  %v1228 = vadd.f32 %v858, %v1227
  %v1229 = vpop.f32.mrb[0].mxu0
  %1230 = vmatprep.mubr.f32.mxu0 %v498
  %1231 = vmatmul.mubr.f32.gmra.mrb[0].mxu0 %v251
  %v1232 = vpop.f32.mrb[0].mxu0
  %v1233 = vadd.f32 %v863, %v1232
  %v1234 = vpop.f32.mrb[0].mxu0
  %1235 = vmatprep.mubr.f32.mxu0 %v501
  %1236 = vmatmul.mubr.f32.gmra.mrb[0].mxu0 %v255
  %v1237 = vpop.f32.mrb[0].mxu0
  %v1238 = vadd.f32 %v868, %v1237
  %v1239 = vpop.f32.mrb[0].mxu0
  %1240 = vmatprep.mubr.f32.mxu0 %v504
  %1241 = vmatmul.mubr.f32.gmra.mrb[0].mxu0 %v259
  %v1242 = vpop.f32.mrb[0].mxu0
  %v1243 = vadd.f32 %v873, %v1242
  %v1244 = vpop.f32.mrb[0].mxu0
  %1245 = vdwg.mxu0
  %vm1246 = vcmask 400384
  %v1247 = vsel %vm1246, %v943, 0.0
  %1248 = vadd.xlane.f32.xlu0 %v1247
  %v1249 = vpop.xlane.xlu0 %1248
  %v1250 = vsel %vm1246, %v948, 0.0
  %1251 = vadd.xlane.f32.xlu0 %v1250
  %v1252 = vpop.xlane.xlu0 %1251
  %v1253 = vsel %vm1246, %v953, 0.0
  %1254 = vadd.xlane.f32.xlu0 %v1253
  %v1255 = vpop.xlane.xlu0 %1254
  %v1256 = vsel %vm1246, %v958, 0.0
  %1257 = vadd.xlane.f32.xlu0 %v1256
  %v1258 = vpop.xlane.xlu0 %1257
  %v1259 = vsel %vm1246, %v963, 0.0
  %1260 = vadd.xlane.f32.xlu0 %v1259
  %v1261 = vpop.xlane.xlu0 %1260
  %v1262 = vsel %vm1246, %v968, 0.0
  %1263 = vadd.xlane.f32.xlu0 %v1262
  %v1264 = vpop.xlane.xlu0 %1263
  %v1265 = vsel %vm1246, %v973, 0.0
  %1266 = vadd.xlane.f32.xlu0 %v1265
  %v1267 = vpop.xlane.xlu0 %1266
  %v1268 = vsel %vm1246, %v978, 0.0
  %1269 = vadd.xlane.f32.xlu0 %v1268
  %v1270 = vpop.xlane.xlu0 %1269
  %v1271 = vsel %vm1246, %v983, 0.0
  %1272 = vadd.xlane.f32.xlu0 %v1271
  %v1273 = vpop.xlane.xlu0 %1272
  %v1274 = vsel %vm1246, %v988, 0.0
  %1275 = vadd.xlane.f32.xlu0 %v1274
  %v1276 = vpop.xlane.xlu0 %1275
  %v1277 = vsel %vm1246, %v993, 0.0
  %1278 = vadd.xlane.f32.xlu0 %v1277
  %v1279 = vpop.xlane.xlu0 %1278
  %v1280 = vsel %vm1246, %v998, 0.0
  %1281 = vadd.xlane.f32.xlu0 %v1280
  %v1282 = vpop.xlane.xlu0 %1281
  %v1283 = vsel %vm1246, %v1003, 0.0
  %1284 = vadd.xlane.f32.xlu0 %v1283
  %v1285 = vpop.xlane.xlu0 %1284
  %v1286 = vsel %vm1246, %v1008, 0.0
  %1287 = vadd.xlane.f32.xlu0 %v1286
  %v1288 = vpop.xlane.xlu0 %1287
  %v1289 = vsel %vm1246, %v1013, 0.0
  %1290 = vadd.xlane.f32.xlu0 %v1289
  %v1291 = vpop.xlane.xlu0 %1290
  %v1292 = vsel %vm1246, %v1018, 0.0
  %1293 = vadd.xlane.f32.xlu0 %v1292
  %v1294 = vpop.xlane.xlu0 %1293
  %v1295 = vsel %vm1246, %v1023, 0.0
  %1296 = vadd.xlane.f32.xlu0 %v1295
  %v1297 = vpop.xlane.xlu0 %1296
  %v1298 = vsel %vm1246, %v1028, 0.0
  %1299 = vadd.xlane.f32.xlu0 %v1298
  %v1300 = vpop.xlane.xlu0 %1299
  %v1301 = vsel %vm1246, %v1033, 0.0
  %1302 = vadd.xlane.f32.xlu0 %v1301
  %v1303 = vpop.xlane.xlu0 %1302
  %v1304 = vsel %vm1246, %v1038, 0.0
  %1305 = vadd.xlane.f32.xlu0 %v1304
  %v1306 = vpop.xlane.xlu0 %1305
  %v1307 = vsel %vm1246, %v1043, 0.0
  %1308 = vadd.xlane.f32.xlu0 %v1307
  %v1309 = vpop.xlane.xlu0 %1308
  %v1310 = vsel %vm1246, %v1048, 0.0
  %1311 = vadd.xlane.f32.xlu0 %v1310
  %v1312 = vpop.xlane.xlu0 %1311
  %v1313 = vsel %vm1246, %v1053, 0.0
  %1314 = vadd.xlane.f32.xlu0 %v1313
  %v1315 = vpop.xlane.xlu0 %1314
  %v1316 = vsel %vm1246, %v1058, 0.0
  %1317 = vadd.xlane.f32.xlu0 %v1316
  %v1318 = vpop.xlane.xlu0 %1317
  %v1319 = vsel %vm1246, %v1063, 0.0
  %1320 = vadd.xlane.f32.xlu0 %v1319
  %v1321 = vpop.xlane.xlu0 %1320
  %v1322 = vsel %vm1246, %v1068, 0.0
  %1323 = vadd.xlane.f32.xlu0 %v1322
  %v1324 = vpop.xlane.xlu0 %1323
  %v1325 = vsel %vm1246, %v1073, 0.0
  %1326 = vadd.xlane.f32.xlu0 %v1325
  %v1327 = vpop.xlane.xlu0 %1326
  %v1328 = vsel %vm1246, %v1078, 0.0
  %1329 = vadd.xlane.f32.xlu0 %v1328
  %v1330 = vpop.xlane.xlu0 %1329
  %v1331 = vsel %vm1246, %v1083, 0.0
  %1332 = vadd.xlane.f32.xlu0 %v1331
  %v1333 = vpop.xlane.xlu0 %1332
  %v1334 = vsel %vm1246, %v1088, 0.0
  %1335 = vadd.xlane.f32.xlu0 %v1334
  %v1336 = vpop.xlane.xlu0 %1335
  %v1337 = vsel %vm1246, %v1093, 0.0
  %1338 = vadd.xlane.f32.xlu0 %v1337
  %v1339 = vpop.xlane.xlu0 %1338
  %v1340 = vsel %vm1246, %v1098, 0.0
  %1341 = vadd.xlane.f32.xlu0 %v1340
  %v1342 = vpop.xlane.xlu0 %1341
  %v1343 = vsel %vm1246, %v1103, 0.0
  %1344 = vadd.xlane.f32.xlu0 %v1343
  %v1345 = vpop.xlane.xlu0 %1344
  %v1346 = vsel %vm1246, %v1108, 0.0
  %1347 = vadd.xlane.f32.xlu0 %v1346
  %v1348 = vpop.xlane.xlu0 %1347
  %v1349 = vsel %vm1246, %v1113, 0.0
  %1350 = vadd.xlane.f32.xlu0 %v1349
  %v1351 = vpop.xlane.xlu0 %1350
  %v1352 = vsel %vm1246, %v1118, 0.0
  %1353 = vadd.xlane.f32.xlu0 %v1352
  %v1354 = vpop.xlane.xlu0 %1353
  %v1355 = vsel %vm1246, %v1123, 0.0
  %1356 = vadd.xlane.f32.xlu0 %v1355
  %v1357 = vpop.xlane.xlu0 %1356
  %v1358 = vsel %vm1246, %v1128, 0.0
  %1359 = vadd.xlane.f32.xlu0 %v1358
  %v1360 = vpop.xlane.xlu0 %1359
  %v1361 = vsel %vm1246, %v1133, 0.0
  %1362 = vadd.xlane.f32.xlu0 %v1361
  %v1363 = vpop.xlane.xlu0 %1362
  %v1364 = vsel %vm1246, %v1138, 0.0
  %1365 = vadd.xlane.f32.xlu0 %v1364
  %v1366 = vpop.xlane.xlu0 %1365
  %v1367 = vsel %vm1246, %v1143, 0.0
  %1368 = vadd.xlane.f32.xlu0 %v1367
  %v1369 = vpop.xlane.xlu0 %1368
  %v1370 = vsel %vm1246, %v1148, 0.0
  %1371 = vadd.xlane.f32.xlu0 %v1370
  %v1372 = vpop.xlane.xlu0 %1371
  %v1373 = vsel %vm1246, %v1153, 0.0
  %1374 = vadd.xlane.f32.xlu0 %v1373
  %v1375 = vpop.xlane.xlu0 %1374
  %v1376 = vsel %vm1246, %v1158, 0.0
  %1377 = vadd.xlane.f32.xlu0 %v1376
  %v1378 = vpop.xlane.xlu0 %1377
  %v1379 = vsel %vm1246, %v1163, 0.0
  %1380 = vadd.xlane.f32.xlu0 %v1379
  %v1381 = vpop.xlane.xlu0 %1380
  %v1382 = vsel %vm1246, %v1168, 0.0
  %1383 = vadd.xlane.f32.xlu0 %v1382
  %v1384 = vpop.xlane.xlu0 %1383
  %v1385 = vsel %vm1246, %v1173, 0.0
  %1386 = vadd.xlane.f32.xlu0 %v1385
  %v1387 = vpop.xlane.xlu0 %1386
  %v1388 = vsel %vm1246, %v1178, 0.0
  %1389 = vadd.xlane.f32.xlu0 %v1388
  %v1390 = vpop.xlane.xlu0 %1389
  %v1391 = vsel %vm1246, %v1183, 0.0
  %1392 = vadd.xlane.f32.xlu0 %v1391
  %v1393 = vpop.xlane.xlu0 %1392
  %v1394 = vsel %vm1246, %v1188, 0.0
  %1395 = vadd.xlane.f32.xlu0 %v1394
  %v1396 = vpop.xlane.xlu0 %1395
  %v1397 = vsel %vm1246, %v1193, 0.0
  %1398 = vadd.xlane.f32.xlu0 %v1397
  %v1399 = vpop.xlane.xlu0 %1398
  %v1400 = vsel %vm1246, %v1198, 0.0
  %1401 = vadd.xlane.f32.xlu0 %v1400
  %v1402 = vpop.xlane.xlu0 %1401
  %v1403 = vsel %vm1246, %v1203, 0.0
  %1404 = vadd.xlane.f32.xlu0 %v1403
  %v1405 = vpop.xlane.xlu0 %1404
  %v1406 = vsel %vm1246, %v1208, 0.0
  %1407 = vadd.xlane.f32.xlu0 %v1406
  %v1408 = vpop.xlane.xlu0 %1407
  %v1409 = vsel %vm1246, %v1213, 0.0
  %1410 = vadd.xlane.f32.xlu0 %v1409
  %v1411 = vpop.xlane.xlu0 %1410
  %v1412 = vsel %vm1246, %v1218, 0.0
  %1413 = vadd.xlane.f32.xlu0 %v1412
  %v1414 = vpop.xlane.xlu0 %1413
  %v1415 = vsel %vm1246, %v1223, 0.0
  %1416 = vadd.xlane.f32.xlu0 %v1415
  %v1417 = vpop.xlane.xlu0 %1416
  %v1418 = vsel %vm1246, %v1228, 0.0
  %1419 = vadd.xlane.f32.xlu0 %v1418
  %v1420 = vpop.xlane.xlu0 %1419
  %v1421 = vsel %vm1246, %v1233, 0.0
  %1422 = vadd.xlane.f32.xlu0 %v1421
  %v1423 = vpop.xlane.xlu0 %1422
  %v1424 = vsel %vm1246, %v1238, 0.0
  %1425 = vadd.xlane.f32.xlu0 %v1424
  %v1426 = vpop.xlane.xlu0 %1425
  %v1427 = vsel %vm1246, %v1243, 0.0
  %1428 = vadd.xlane.f32.xlu0 %v1427
  %v1429 = vpop.xlane.xlu0 %1428
  %v1430 = vmul.f32 %v1249, 0.020408163
  %v1431 = vmul.f32 %v1252, 0.020408163
  %v1432 = vmul.f32 %v1255, 0.020408163
  %v1433 = vmul.f32 %v1258, 0.020408163
  %v1434 = vmul.f32 %v1261, 0.020408163
  %v1435 = vmul.f32 %v1264, 0.020408163
  %v1436 = vmul.f32 %v1267, 0.020408163
  %v1437 = vmul.f32 %v1270, 0.020408163
  %v1438 = vmul.f32 %v1273, 0.020408163
  %v1439 = vmul.f32 %v1276, 0.020408163
  %v1440 = vmul.f32 %v1279, 0.020408163
  %v1441 = vmul.f32 %v1282, 0.020408163
  %v1442 = vmul.f32 %v1285, 0.020408163
  %v1443 = vmul.f32 %v1288, 0.020408163
  %v1444 = vmul.f32 %v1291, 0.020408163
  %v1445 = vmul.f32 %v1294, 0.020408163
  %v1446 = vmul.f32 %v1297, 0.020408163
  %v1447 = vmul.f32 %v1300, 0.020408163
  %v1448 = vmul.f32 %v1303, 0.020408163
  %v1449 = vmul.f32 %v1306, 0.020408163
  %v1450 = vmul.f32 %v1309, 0.020408163
  %v1451 = vmul.f32 %v1312, 0.020408163
  %v1452 = vmul.f32 %v1315, 0.020408163
  %v1453 = vmul.f32 %v1318, 0.020408163
  %v1454 = vmul.f32 %v1321, 0.020408163
  %v1455 = vmul.f32 %v1324, 0.020408163
  %v1456 = vmul.f32 %v1327, 0.020408163
  %v1457 = vmul.f32 %v1330, 0.020408163
  %v1458 = vmul.f32 %v1333, 0.020408163
  %v1459 = vmul.f32 %v1336, 0.020408163
  %v1460 = vmul.f32 %v1339, 0.020408163
  %v1461 = vmul.f32 %v1342, 0.020408163
  %v1462 = vmul.f32 %v1345, 0.020408163
  %v1463 = vmul.f32 %v1348, 0.020408163
  %v1464 = vmul.f32 %v1351, 0.020408163
  %v1465 = vmul.f32 %v1354, 0.020408163
  %v1466 = vmul.f32 %v1357, 0.020408163
  %v1467 = vmul.f32 %v1360, 0.020408163
  %v1468 = vmul.f32 %v1363, 0.020408163
  %v1469 = vmul.f32 %v1366, 0.020408163
  %v1470 = vmul.f32 %v1369, 0.020408163
  %v1471 = vmul.f32 %v1372, 0.020408163
  %v1472 = vmul.f32 %v1375, 0.020408163
  %v1473 = vmul.f32 %v1378, 0.020408163
  %v1474 = vmul.f32 %v1381, 0.020408163
  %v1475 = vmul.f32 %v1384, 0.020408163
  %v1476 = vmul.f32 %v1387, 0.020408163
  %v1477 = vmul.f32 %v1390, 0.020408163
  %v1478 = vmul.f32 %v1393, 0.020408163
  %v1479 = vmul.f32 %v1396, 0.020408163
  %v1480 = vmul.f32 %v1399, 0.020408163
  %v1481 = vmul.f32 %v1402, 0.020408163
  %v1482 = vmul.f32 %v1405, 0.020408163
  %v1483 = vmul.f32 %v1408, 0.020408163
  %v1484 = vmul.f32 %v1411, 0.020408163
  %v1485 = vmul.f32 %v1414, 0.020408163
  %v1486 = vmul.f32 %v1417, 0.020408163
  %v1487 = vmul.f32 %v1420, 0.020408163
  %v1488 = vmul.f32 %v1423, 0.020408163
  %v1489 = vmul.f32 %v1426, 0.020408163
  %v1490 = vmul.f32 %v1429, 0.020408163
  %v1491 = vsub.f32 %v943, %v1430
  %v1492 = vsub.f32 %v948, %v1431
  %v1493 = vsub.f32 %v953, %v1432
  %v1494 = vsub.f32 %v958, %v1433
  %v1495 = vsub.f32 %v963, %v1434
  %v1496 = vsub.f32 %v968, %v1435
  %v1497 = vsub.f32 %v973, %v1436
  %v1498 = vsub.f32 %v978, %v1437
  %v1499 = vsub.f32 %v983, %v1438
  %v1500 = vsub.f32 %v988, %v1439
  %v1501 = vsub.f32 %v993, %v1440
  %v1502 = vsub.f32 %v998, %v1441
  %v1503 = vsub.f32 %v1003, %v1442
  %v1504 = vsub.f32 %v1008, %v1443
  %v1505 = vsub.f32 %v1013, %v1444
  %v1506 = vsub.f32 %v1018, %v1445
  %v1507 = vsub.f32 %v1023, %v1446
  %v1508 = vsub.f32 %v1028, %v1447
  %v1509 = vsub.f32 %v1033, %v1448
  %v1510 = vsub.f32 %v1038, %v1449
  %v1511 = vsub.f32 %v1043, %v1450
  %v1512 = vsub.f32 %v1048, %v1451
  %v1513 = vsub.f32 %v1053, %v1452
  %v1514 = vsub.f32 %v1058, %v1453
  %v1515 = vsub.f32 %v1063, %v1454
  %v1516 = vsub.f32 %v1068, %v1455
  %v1517 = vsub.f32 %v1073, %v1456
  %v1518 = vsub.f32 %v1078, %v1457
  %v1519 = vsub.f32 %v1083, %v1458
  %v1520 = vsub.f32 %v1088, %v1459
  %v1521 = vsub.f32 %v1093, %v1460
  %v1522 = vsub.f32 %v1098, %v1461
  %v1523 = vsub.f32 %v1103, %v1462
  %v1524 = vsub.f32 %v1108, %v1463
  %v1525 = vsub.f32 %v1113, %v1464
  %v1526 = vsub.f32 %v1118, %v1465
  %v1527 = vsub.f32 %v1123, %v1466
  %v1528 = vsub.f32 %v1128, %v1467
  %v1529 = vsub.f32 %v1133, %v1468
  %v1530 = vsub.f32 %v1138, %v1469
  %v1531 = vsub.f32 %v1143, %v1470
  %v1532 = vsub.f32 %v1148, %v1471
  %v1533 = vsub.f32 %v1153, %v1472
  %v1534 = vsub.f32 %v1158, %v1473
  %v1535 = vsub.f32 %v1163, %v1474
  %v1536 = vsub.f32 %v1168, %v1475
  %v1537 = vsub.f32 %v1173, %v1476
  %v1538 = vsub.f32 %v1178, %v1477
  %v1539 = vsub.f32 %v1183, %v1478
  %v1540 = vsub.f32 %v1188, %v1479
  %v1541 = vsub.f32 %v1193, %v1480
  %v1542 = vsub.f32 %v1198, %v1481
  %v1543 = vsub.f32 %v1203, %v1482
  %v1544 = vsub.f32 %v1208, %v1483
  %v1545 = vsub.f32 %v1213, %v1484
  %v1546 = vsub.f32 %v1218, %v1485
  %v1547 = vsub.f32 %v1223, %v1486
  %v1548 = vsub.f32 %v1228, %v1487
  %v1549 = vsub.f32 %v1233, %v1488
  %v1550 = vsub.f32 %v1238, %v1489
  %v1551 = vsub.f32 %v1243, %v1490
  %v1552 = vmul.f32 %v1491, %v1491
  %v1553 = vmul.f32 %v1492, %v1492
  %v1554 = vmul.f32 %v1493, %v1493
  %v1555 = vmul.f32 %v1494, %v1494
  %v1556 = vmul.f32 %v1495, %v1495
  %v1557 = vmul.f32 %v1496, %v1496
  %v1558 = vmul.f32 %v1497, %v1497
  %v1559 = vmul.f32 %v1498, %v1498
  %v1560 = vmul.f32 %v1499, %v1499
  %v1561 = vmul.f32 %v1500, %v1500
  %v1562 = vmul.f32 %v1501, %v1501
  %v1563 = vmul.f32 %v1502, %v1502
  %v1564 = vmul.f32 %v1503, %v1503
  %v1565 = vmul.f32 %v1504, %v1504
  %v1566 = vmul.f32 %v1505, %v1505
  %v1567 = vmul.f32 %v1506, %v1506
  %v1568 = vmul.f32 %v1507, %v1507
  %v1569 = vmul.f32 %v1508, %v1508
  %v1570 = vmul.f32 %v1509, %v1509
  %v1571 = vmul.f32 %v1510, %v1510
  %v1572 = vmul.f32 %v1511, %v1511
  %v1573 = vmul.f32 %v1512, %v1512
  %v1574 = vmul.f32 %v1513, %v1513
  %v1575 = vmul.f32 %v1514, %v1514
  %v1576 = vmul.f32 %v1515, %v1515
  %v1577 = vmul.f32 %v1516, %v1516
  %v1578 = vmul.f32 %v1517, %v1517
  %v1579 = vmul.f32 %v1518, %v1518
  %v1580 = vmul.f32 %v1519, %v1519
  %v1581 = vmul.f32 %v1520, %v1520
  %v1582 = vmul.f32 %v1521, %v1521
  %v1583 = vmul.f32 %v1522, %v1522
  %v1584 = vmul.f32 %v1523, %v1523
  %v1585 = vmul.f32 %v1524, %v1524
  %v1586 = vmul.f32 %v1525, %v1525
  %v1587 = vmul.f32 %v1526, %v1526
  %v1588 = vmul.f32 %v1527, %v1527
  %v1589 = vmul.f32 %v1528, %v1528
  %v1590 = vmul.f32 %v1529, %v1529
  %v1591 = vmul.f32 %v1530, %v1530
  %v1592 = vmul.f32 %v1531, %v1531
  %v1593 = vmul.f32 %v1532, %v1532
  %v1594 = vmul.f32 %v1533, %v1533
  %v1595 = vmul.f32 %v1534, %v1534
  %v1596 = vmul.f32 %v1535, %v1535
  %v1597 = vmul.f32 %v1536, %v1536
  %v1598 = vmul.f32 %v1537, %v1537
  %v1599 = vmul.f32 %v1538, %v1538
  %v1600 = vmul.f32 %v1539, %v1539
  %v1601 = vmul.f32 %v1540, %v1540
  %v1602 = vmul.f32 %v1541, %v1541
  %v1603 = vmul.f32 %v1542, %v1542
  %v1604 = vmul.f32 %v1543, %v1543
  %v1605 = vmul.f32 %v1544, %v1544
  %v1606 = vmul.f32 %v1545, %v1545
  %v1607 = vmul.f32 %v1546, %v1546
  %v1608 = vmul.f32 %v1547, %v1547
  %v1609 = vmul.f32 %v1548, %v1548
  %v1610 = vmul.f32 %v1549, %v1549
  %v1611 = vmul.f32 %v1550, %v1550
  %v1612 = vmul.f32 %v1551, %v1551
  %v1613 = vsel %vm1246, %v1552, 0.0
  %1614 = vadd.xlane.f32.xlu0 %v1613
  %v1615 = vpop.xlane.xlu0 %1614
  %v1616 = vsel %vm1246, %v1553, 0.0
  %1617 = vadd.xlane.f32.xlu0 %v1616
  %v1618 = vpop.xlane.xlu0 %1617
  %v1619 = vsel %vm1246, %v1554, 0.0
  %1620 = vadd.xlane.f32.xlu0 %v1619
  %v1621 = vpop.xlane.xlu0 %1620
  %v1622 = vsel %vm1246, %v1555, 0.0
  %1623 = vadd.xlane.f32.xlu0 %v1622
  %v1624 = vpop.xlane.xlu0 %1623
  %v1625 = vsel %vm1246, %v1556, 0.0
  %1626 = vadd.xlane.f32.xlu0 %v1625
  %v1627 = vpop.xlane.xlu0 %1626
  %v1628 = vsel %vm1246, %v1557, 0.0
  %1629 = vadd.xlane.f32.xlu0 %v1628
  %v1630 = vpop.xlane.xlu0 %1629
  %v1631 = vsel %vm1246, %v1558, 0.0
  %1632 = vadd.xlane.f32.xlu0 %v1631
  %v1633 = vpop.xlane.xlu0 %1632
  %v1634 = vsel %vm1246, %v1559, 0.0
  %1635 = vadd.xlane.f32.xlu0 %v1634
  %v1636 = vpop.xlane.xlu0 %1635
  %v1637 = vsel %vm1246, %v1560, 0.0
  %1638 = vadd.xlane.f32.xlu0 %v1637
  %v1639 = vpop.xlane.xlu0 %1638
  %v1640 = vsel %vm1246, %v1561, 0.0
  %1641 = vadd.xlane.f32.xlu0 %v1640
  %v1642 = vpop.xlane.xlu0 %1641
  %v1643 = vsel %vm1246, %v1562, 0.0
  %1644 = vadd.xlane.f32.xlu0 %v1643
  %v1645 = vpop.xlane.xlu0 %1644
  %v1646 = vsel %vm1246, %v1563, 0.0
  %1647 = vadd.xlane.f32.xlu0 %v1646
  %v1648 = vpop.xlane.xlu0 %1647
  %v1649 = vsel %vm1246, %v1564, 0.0
  %1650 = vadd.xlane.f32.xlu0 %v1649
  %v1651 = vpop.xlane.xlu0 %1650
  %v1652 = vsel %vm1246, %v1565, 0.0
  %1653 = vadd.xlane.f32.xlu0 %v1652
  %v1654 = vpop.xlane.xlu0 %1653
  %v1655 = vsel %vm1246, %v1566, 0.0
  %1656 = vadd.xlane.f32.xlu0 %v1655
  %v1657 = vpop.xlane.xlu0 %1656
  %v1658 = vsel %vm1246, %v1567, 0.0
  %1659 = vadd.xlane.f32.xlu0 %v1658
  %v1660 = vpop.xlane.xlu0 %1659
  %v1661 = vsel %vm1246, %v1568, 0.0
  %1662 = vadd.xlane.f32.xlu0 %v1661
  %v1663 = vpop.xlane.xlu0 %1662
  %v1664 = vsel %vm1246, %v1569, 0.0
  %1665 = vadd.xlane.f32.xlu0 %v1664
  %v1666 = vpop.xlane.xlu0 %1665
  %v1667 = vsel %vm1246, %v1570, 0.0
  %1668 = vadd.xlane.f32.xlu0 %v1667
  %v1669 = vpop.xlane.xlu0 %1668
  %v1670 = vsel %vm1246, %v1571, 0.0
  %1671 = vadd.xlane.f32.xlu0 %v1670
  %v1672 = vpop.xlane.xlu0 %1671
  %v1673 = vsel %vm1246, %v1572, 0.0
  %1674 = vadd.xlane.f32.xlu0 %v1673
  %v1675 = vpop.xlane.xlu0 %1674
  %v1676 = vsel %vm1246, %v1573, 0.0
  %1677 = vadd.xlane.f32.xlu0 %v1676
  %v1678 = vpop.xlane.xlu0 %1677
  %v1679 = vsel %vm1246, %v1574, 0.0
  %1680 = vadd.xlane.f32.xlu0 %v1679
  %v1681 = vpop.xlane.xlu0 %1680
  %v1682 = vsel %vm1246, %v1575, 0.0
  %1683 = vadd.xlane.f32.xlu0 %v1682
  %v1684 = vpop.xlane.xlu0 %1683
  %v1685 = vsel %vm1246, %v1576, 0.0
  %1686 = vadd.xlane.f32.xlu0 %v1685
  %v1687 = vpop.xlane.xlu0 %1686
  %v1688 = vsel %vm1246, %v1577, 0.0
  %1689 = vadd.xlane.f32.xlu0 %v1688
  %v1690 = vpop.xlane.xlu0 %1689
  %v1691 = vsel %vm1246, %v1578, 0.0
  %1692 = vadd.xlane.f32.xlu0 %v1691
  %v1693 = vpop.xlane.xlu0 %1692
  %v1694 = vsel %vm1246, %v1579, 0.0
  %1695 = vadd.xlane.f32.xlu0 %v1694
  %v1696 = vpop.xlane.xlu0 %1695
  %v1697 = vsel %vm1246, %v1580, 0.0
  %1698 = vadd.xlane.f32.xlu0 %v1697
  %v1699 = vpop.xlane.xlu0 %1698
  %v1700 = vsel %vm1246, %v1581, 0.0
  %1701 = vadd.xlane.f32.xlu0 %v1700
  %v1702 = vpop.xlane.xlu0 %1701
  %v1703 = vsel %vm1246, %v1582, 0.0
  %1704 = vadd.xlane.f32.xlu0 %v1703
  %v1705 = vpop.xlane.xlu0 %1704
  %v1706 = vsel %vm1246, %v1583, 0.0
  %1707 = vadd.xlane.f32.xlu0 %v1706
  %v1708 = vpop.xlane.xlu0 %1707
  %v1709 = vsel %vm1246, %v1584, 0.0
  %1710 = vadd.xlane.f32.xlu0 %v1709
  %v1711 = vpop.xlane.xlu0 %1710
  %v1712 = vsel %vm1246, %v1585, 0.0
  %1713 = vadd.xlane.f32.xlu0 %v1712
  %v1714 = vpop.xlane.xlu0 %1713
  %v1715 = vsel %vm1246, %v1586, 0.0
  %1716 = vadd.xlane.f32.xlu0 %v1715
  %v1717 = vpop.xlane.xlu0 %1716
  %v1718 = vsel %vm1246, %v1587, 0.0
  %1719 = vadd.xlane.f32.xlu0 %v1718
  %v1720 = vpop.xlane.xlu0 %1719
  %v1721 = vsel %vm1246, %v1588, 0.0
  %1722 = vadd.xlane.f32.xlu0 %v1721
  %v1723 = vpop.xlane.xlu0 %1722
  %v1724 = vsel %vm1246, %v1589, 0.0
  %1725 = vadd.xlane.f32.xlu0 %v1724
  %v1726 = vpop.xlane.xlu0 %1725
  %v1727 = vsel %vm1246, %v1590, 0.0
  %1728 = vadd.xlane.f32.xlu0 %v1727
  %v1729 = vpop.xlane.xlu0 %1728
  %v1730 = vsel %vm1246, %v1591, 0.0
  %1731 = vadd.xlane.f32.xlu0 %v1730
  %v1732 = vpop.xlane.xlu0 %1731
  %v1733 = vsel %vm1246, %v1592, 0.0
  %1734 = vadd.xlane.f32.xlu0 %v1733
  %v1735 = vpop.xlane.xlu0 %1734
  %v1736 = vsel %vm1246, %v1593, 0.0
  %1737 = vadd.xlane.f32.xlu0 %v1736
  %v1738 = vpop.xlane.xlu0 %1737
  %v1739 = vsel %vm1246, %v1594, 0.0
  %1740 = vadd.xlane.f32.xlu0 %v1739
  %v1741 = vpop.xlane.xlu0 %1740
  %v1742 = vsel %vm1246, %v1595, 0.0
  %1743 = vadd.xlane.f32.xlu0 %v1742
  %v1744 = vpop.xlane.xlu0 %1743
  %v1745 = vsel %vm1246, %v1596, 0.0
  %1746 = vadd.xlane.f32.xlu0 %v1745
  %v1747 = vpop.xlane.xlu0 %1746
  %v1748 = vsel %vm1246, %v1597, 0.0
  %1749 = vadd.xlane.f32.xlu0 %v1748
  %v1750 = vpop.xlane.xlu0 %1749
  %v1751 = vsel %vm1246, %v1598, 0.0
  %1752 = vadd.xlane.f32.xlu0 %v1751
  %v1753 = vpop.xlane.xlu0 %1752
  %v1754 = vsel %vm1246, %v1599, 0.0
  %1755 = vadd.xlane.f32.xlu0 %v1754
  %v1756 = vpop.xlane.xlu0 %1755
  %v1757 = vsel %vm1246, %v1600, 0.0
  %1758 = vadd.xlane.f32.xlu0 %v1757
  %v1759 = vpop.xlane.xlu0 %1758
  %v1760 = vsel %vm1246, %v1601, 0.0
  %1761 = vadd.xlane.f32.xlu0 %v1760
  %v1762 = vpop.xlane.xlu0 %1761
  %v1763 = vsel %vm1246, %v1602, 0.0
  %1764 = vadd.xlane.f32.xlu0 %v1763
  %v1765 = vpop.xlane.xlu0 %1764
  %v1766 = vsel %vm1246, %v1603, 0.0
  %1767 = vadd.xlane.f32.xlu0 %v1766
  %v1768 = vpop.xlane.xlu0 %1767
  %v1769 = vsel %vm1246, %v1604, 0.0
  %1770 = vadd.xlane.f32.xlu0 %v1769
  %v1771 = vpop.xlane.xlu0 %1770
  %v1772 = vsel %vm1246, %v1605, 0.0
  %1773 = vadd.xlane.f32.xlu0 %v1772
  %v1774 = vpop.xlane.xlu0 %1773
  %v1775 = vsel %vm1246, %v1606, 0.0
  %1776 = vadd.xlane.f32.xlu0 %v1775
  %v1777 = vpop.xlane.xlu0 %1776
  %v1778 = vsel %vm1246, %v1607, 0.0
  %1779 = vadd.xlane.f32.xlu0 %v1778
  %v1780 = vpop.xlane.xlu0 %1779
  %v1781 = vsel %vm1246, %v1608, 0.0
  %1782 = vadd.xlane.f32.xlu0 %v1781
  %v1783 = vpop.xlane.xlu0 %1782
  %v1784 = vsel %vm1246, %v1609, 0.0
  %1785 = vadd.xlane.f32.xlu0 %v1784
  %v1786 = vpop.xlane.xlu0 %1785
  %v1787 = vsel %vm1246, %v1610, 0.0
  %1788 = vadd.xlane.f32.xlu0 %v1787
  %v1789 = vpop.xlane.xlu0 %1788
  %v1790 = vsel %vm1246, %v1611, 0.0
  %1791 = vadd.xlane.f32.xlu0 %v1790
  %v1792 = vpop.xlane.xlu0 %1791
  %v1793 = vsel %vm1246, %v1612, 0.0
  %1794 = vadd.xlane.f32.xlu0 %v1793
  %v1795 = vpop.xlane.xlu0 %1794
  %v1796 = vmul.f32 %v1615, 0.020408163
  %v1797 = vmul.f32 %v1618, 0.020408163
  %v1798 = vmul.f32 %v1621, 0.020408163
  %v1799 = vmul.f32 %v1624, 0.020408163
  %v1800 = vmul.f32 %v1627, 0.020408163
  %v1801 = vmul.f32 %v1630, 0.020408163
  %v1802 = vmul.f32 %v1633, 0.020408163
  %v1803 = vmul.f32 %v1636, 0.020408163
  %v1804 = vmul.f32 %v1639, 0.020408163
  %v1805 = vmul.f32 %v1642, 0.020408163
  %v1806 = vmul.f32 %v1645, 0.020408163
  %v1807 = vmul.f32 %v1648, 0.020408163
  %v1808 = vmul.f32 %v1651, 0.020408163
  %v1809 = vmul.f32 %v1654, 0.020408163
  %v1810 = vmul.f32 %v1657, 0.020408163
  %v1811 = vmul.f32 %v1660, 0.020408163
  %v1812 = vmul.f32 %v1663, 0.020408163
  %v1813 = vmul.f32 %v1666, 0.020408163
  %v1814 = vmul.f32 %v1669, 0.020408163
  %v1815 = vmul.f32 %v1672, 0.020408163
  %v1816 = vmul.f32 %v1675, 0.020408163
  %v1817 = vmul.f32 %v1678, 0.020408163
  %v1818 = vmul.f32 %v1681, 0.020408163
  %v1819 = vmul.f32 %v1684, 0.020408163
  %v1820 = vmul.f32 %v1687, 0.020408163
  %v1821 = vmul.f32 %v1690, 0.020408163
  %v1822 = vmul.f32 %v1693, 0.020408163
  %v1823 = vmul.f32 %v1696, 0.020408163
  %v1824 = vmul.f32 %v1699, 0.020408163
  %v1825 = vmul.f32 %v1702, 0.020408163
  %v1826 = vmul.f32 %v1705, 0.020408163
  %v1827 = vmul.f32 %v1708, 0.020408163
  %v1828 = vmul.f32 %v1711, 0.020408163
  %v1829 = vmul.f32 %v1714, 0.020408163
  %v1830 = vmul.f32 %v1717, 0.020408163
  %v1831 = vmul.f32 %v1720, 0.020408163
  %v1832 = vmul.f32 %v1723, 0.020408163
  %v1833 = vmul.f32 %v1726, 0.020408163
  %v1834 = vmul.f32 %v1729, 0.020408163
  %v1835 = vmul.f32 %v1732, 0.020408163
  %v1836 = vmul.f32 %v1735, 0.020408163
  %v1837 = vmul.f32 %v1738, 0.020408163
  %v1838 = vmul.f32 %v1741, 0.020408163
  %v1839 = vmul.f32 %v1744, 0.020408163
  %v1840 = vmul.f32 %v1747, 0.020408163
  %v1841 = vmul.f32 %v1750, 0.020408163
  %v1842 = vmul.f32 %v1753, 0.020408163
  %v1843 = vmul.f32 %v1756, 0.020408163
  %v1844 = vmul.f32 %v1759, 0.020408163
  %v1845 = vmul.f32 %v1762, 0.020408163
  %v1846 = vmul.f32 %v1765, 0.020408163
  %v1847 = vmul.f32 %v1768, 0.020408163
  %v1848 = vmul.f32 %v1771, 0.020408163
  %v1849 = vmul.f32 %v1774, 0.020408163
  %v1850 = vmul.f32 %v1777, 0.020408163
  %v1851 = vmul.f32 %v1780, 0.020408163
  %v1852 = vmul.f32 %v1783, 0.020408163
  %v1853 = vmul.f32 %v1786, 0.020408163
  %v1854 = vmul.f32 %v1789, 0.020408163
  %v1855 = vmul.f32 %v1792, 0.020408163
  %v1856 = vmul.f32 %v1795, 0.020408163
  %v1857 = vld [vmem:[%s2] sm:$0xff]
  %v1858 = vld [vmem:[%s2 + $0x8] sm:$0xff]
  %v1859 = vld [vmem:[%s2 + $0x10] sm:$0xff]
  %v1860 = vld [vmem:[%s2 + $0x18] sm:$0xff]
  %v1861 = vld [vmem:[%s2 + $0x20] sm:$0xff]
  %v1862 = vld [vmem:[%s2 + $0x28] sm:$0xff]
  %v1863 = vld [vmem:[%s2 + $0x30] sm:$0xff]
  %v1864 = vld [vmem:[%s2 + $0x38] sm:$0xff]
  %v1865 = vld [vmem:[%s2 + $0x40] sm:$0xff]
  %v1866 = vld [vmem:[%s2 + $0x48] sm:$0xff]
  %v1867 = vld [vmem:[%s2 + $0x50] sm:$0xff]
  %v1868 = vld [vmem:[%s2 + $0x58] sm:$0xff]
  %v1869 = vld [vmem:[%s2 + $0x60] sm:$0xff]
  %v1870 = vld [vmem:[%s2 + $0x68] sm:$0xff]
  %v1871 = vld [vmem:[%s2 + $0x70] sm:$0xff]
  %v1872 = vld [vmem:[%s2 + $0x78] sm:$0xff]
  %v1873 = vld [vmem:[%s2 + $0x80] sm:$0xff]
  %v1874 = vld [vmem:[%s2 + $0x88] sm:$0xff]
  %v1875 = vld [vmem:[%s2 + $0x90] sm:$0xff]
  %v1876 = vld [vmem:[%s2 + $0x98] sm:$0xff]
  %v1877 = vld [vmem:[%s2 + $0xa0] sm:$0xff]
  %v1878 = vld [vmem:[%s2 + $0xa8] sm:$0xff]
  %v1879 = vld [vmem:[%s2 + $0xb0] sm:$0xff]
  %v1880 = vld [vmem:[%s2 + $0xb8] sm:$0xff]
  %v1881 = vld [vmem:[%s2 + $0xc0] sm:$0xff]
  %v1882 = vld [vmem:[%s2 + $0xc8] sm:$0xff]
  %v1883 = vld [vmem:[%s2 + $0xd0] sm:$0xff]
  %v1884 = vld [vmem:[%s2 + $0xd8] sm:$0xff]
  %v1885 = vld [vmem:[%s2 + $0xe0] sm:$0xff]
  %v1886 = vld [vmem:[%s2 + $0xe8] sm:$0xff]
  %v1887 = vld [vmem:[%s2 + $0xf0] sm:$0xff]
  %v1888 = vld [vmem:[%s2 + $0xf8] sm:$0xff]
  %v1889 = vld [vmem:[%s2 + $0x100] sm:$0xff]
  %v1890 = vld [vmem:[%s2 + $0x108] sm:$0xff]
  %v1891 = vld [vmem:[%s2 + $0x110] sm:$0xff]
  %v1892 = vld [vmem:[%s2 + $0x118] sm:$0xff]
  %v1893 = vld [vmem:[%s2 + $0x120] sm:$0xff]
  %v1894 = vld [vmem:[%s2 + $0x128] sm:$0xff]
  %v1895 = vld [vmem:[%s2 + $0x130] sm:$0xff]
  %v1896 = vld [vmem:[%s2 + $0x138] sm:$0xff]
  %v1897 = vld [vmem:[%s2 + $0x140] sm:$0xff]
  %v1898 = vld [vmem:[%s2 + $0x148] sm:$0xff]
  %v1899 = vld [vmem:[%s2 + $0x150] sm:$0xff]
  %v1900 = vld [vmem:[%s2 + $0x158] sm:$0xff]
  %v1901 = vld [vmem:[%s2 + $0x160] sm:$0xff]
  %v1902 = vld [vmem:[%s2 + $0x168] sm:$0xff]
  %v1903 = vld [vmem:[%s2 + $0x170] sm:$0xff]
  %v1904 = vld [vmem:[%s2 + $0x178] sm:$0xff]
  %v1905 = vld [vmem:[%s2 + $0x180] sm:$0xff]
  %v1906 = vld [vmem:[%s2 + $0x188] sm:$0xff]
  %v1907 = vld [vmem:[%s2 + $0x190] sm:$0xff]
  %v1908 = vld [vmem:[%s2 + $0x198] sm:$0xff]
  %v1909 = vld [vmem:[%s2 + $0x1a0] sm:$0xff]
  %v1910 = vld [vmem:[%s2 + $0x1a8] sm:$0xff]
  %v1911 = vld [vmem:[%s2 + $0x1b0] sm:$0xff]
  %v1912 = vld [vmem:[%s2 + $0x1b8] sm:$0xff]
  %v1913 = vld [vmem:[%s2 + $0x1c0] sm:$0xff]
  %v1914 = vld [vmem:[%s2 + $0x1c8] sm:$0xff]
  %v1915 = vld [vmem:[%s2 + $0x1d0] sm:$0xff]
  %v1916 = vld [vmem:[%s2 + $0x1d8] sm:$0xff]
  %v1917 = vld [vmem:[%s2 + $0x1e0] sm:$0xff]
  %v1918 = vadd.f32 %v1796, 1e-05
  %v1919 = vadd.f32 %v1797, 1e-05
  %v1920 = vadd.f32 %v1798, 1e-05
  %v1921 = vadd.f32 %v1799, 1e-05
  %v1922 = vadd.f32 %v1800, 1e-05
  %v1923 = vadd.f32 %v1801, 1e-05
  %v1924 = vadd.f32 %v1802, 1e-05
  %v1925 = vadd.f32 %v1803, 1e-05
  %v1926 = vadd.f32 %v1804, 1e-05
  %v1927 = vadd.f32 %v1805, 1e-05
  %v1928 = vadd.f32 %v1806, 1e-05
  %v1929 = vadd.f32 %v1807, 1e-05
  %v1930 = vadd.f32 %v1808, 1e-05
  %v1931 = vadd.f32 %v1809, 1e-05
  %v1932 = vadd.f32 %v1810, 1e-05
  %v1933 = vadd.f32 %v1811, 1e-05
  %v1934 = vadd.f32 %v1812, 1e-05
  %v1935 = vadd.f32 %v1813, 1e-05
  %v1936 = vadd.f32 %v1814, 1e-05
  %v1937 = vadd.f32 %v1815, 1e-05
  %v1938 = vadd.f32 %v1816, 1e-05
  %v1939 = vadd.f32 %v1817, 1e-05
  %v1940 = vadd.f32 %v1818, 1e-05
  %v1941 = vadd.f32 %v1819, 1e-05
  %v1942 = vadd.f32 %v1820, 1e-05
  %v1943 = vadd.f32 %v1821, 1e-05
  %v1944 = vadd.f32 %v1822, 1e-05
  %v1945 = vadd.f32 %v1823, 1e-05
  %v1946 = vadd.f32 %v1824, 1e-05
  %v1947 = vadd.f32 %v1825, 1e-05
  %v1948 = vadd.f32 %v1826, 1e-05
  %v1949 = vadd.f32 %v1827, 1e-05
  %v1950 = vadd.f32 %v1828, 1e-05
  %v1951 = vadd.f32 %v1829, 1e-05
  %v1952 = vadd.f32 %v1830, 1e-05
  %v1953 = vadd.f32 %v1831, 1e-05
  %v1954 = vadd.f32 %v1832, 1e-05
  %v1955 = vadd.f32 %v1833, 1e-05
  %v1956 = vadd.f32 %v1834, 1e-05
  %v1957 = vadd.f32 %v1835, 1e-05
  %v1958 = vadd.f32 %v1836, 1e-05
  %v1959 = vadd.f32 %v1837, 1e-05
  %v1960 = vadd.f32 %v1838, 1e-05
  %v1961 = vadd.f32 %v1839, 1e-05
  %v1962 = vadd.f32 %v1840, 1e-05
  %v1963 = vadd.f32 %v1841, 1e-05
  %v1964 = vadd.f32 %v1842, 1e-05
  %v1965 = vadd.f32 %v1843, 1e-05
  %v1966 = vadd.f32 %v1844, 1e-05
  %v1967 = vadd.f32 %v1845, 1e-05
  %v1968 = vadd.f32 %v1846, 1e-05
  %v1969 = vadd.f32 %v1847, 1e-05
  %v1970 = vadd.f32 %v1848, 1e-05
  %v1971 = vadd.f32 %v1849, 1e-05
  %v1972 = vadd.f32 %v1850, 1e-05
  %v1973 = vadd.f32 %v1851, 1e-05
  %v1974 = vadd.f32 %v1852, 1e-05
  %v1975 = vadd.f32 %v1853, 1e-05
  %v1976 = vadd.f32 %v1854, 1e-05
  %v1977 = vadd.f32 %v1855, 1e-05
  %v1978 = vadd.f32 %v1856, 1e-05
  %v1979 = vrsqrt.pop %v1918
  %v1980 = vrsqrt.pop %v1919
  %v1981 = vrsqrt.pop %v1920
  %v1982 = vrsqrt.pop %v1921
  %v1983 = vrsqrt.pop %v1922
  %v1984 = vrsqrt.pop %v1923
  %v1985 = vrsqrt.pop %v1924
  %v1986 = vrsqrt.pop %v1925
  %v1987 = vrsqrt.pop %v1926
  %v1988 = vrsqrt.pop %v1927
  %v1989 = vrsqrt.pop %v1928
  %v1990 = vrsqrt.pop %v1929
  %v1991 = vrsqrt.pop %v1930
  %v1992 = vrsqrt.pop %v1931
  %v1993 = vrsqrt.pop %v1932
  %v1994 = vrsqrt.pop %v1933
  %v1995 = vrsqrt.pop %v1934
  %v1996 = vrsqrt.pop %v1935
  %v1997 = vrsqrt.pop %v1936
  %v1998 = vrsqrt.pop %v1937
  %v1999 = vrsqrt.pop %v1938
  %v2000 = vrsqrt.pop %v1939
  %v2001 = vrsqrt.pop %v1940
  %v2002 = vrsqrt.pop %v1941
  %v2003 = vrsqrt.pop %v1942
  %v2004 = vrsqrt.pop %v1943
  %v2005 = vrsqrt.pop %v1944
  %v2006 = vrsqrt.pop %v1945
  %v2007 = vrsqrt.pop %v1946
  %v2008 = vrsqrt.pop %v1947
  %v2009 = vrsqrt.pop %v1948
  %v2010 = vrsqrt.pop %v1949
  %v2011 = vrsqrt.pop %v1950
  %v2012 = vrsqrt.pop %v1951
  %v2013 = vrsqrt.pop %v1952
  %v2014 = vrsqrt.pop %v1953
  %v2015 = vrsqrt.pop %v1954
  %v2016 = vrsqrt.pop %v1955
  %v2017 = vrsqrt.pop %v1956
  %v2018 = vrsqrt.pop %v1957
  %v2019 = vrsqrt.pop %v1958
  %v2020 = vrsqrt.pop %v1959
  %v2021 = vrsqrt.pop %v1960
  %v2022 = vrsqrt.pop %v1961
  %v2023 = vrsqrt.pop %v1962
  %v2024 = vrsqrt.pop %v1963
  %v2025 = vrsqrt.pop %v1964
  %v2026 = vrsqrt.pop %v1965
  %v2027 = vrsqrt.pop %v1966
  %v2028 = vrsqrt.pop %v1967
  %v2029 = vrsqrt.pop %v1968
  %v2030 = vrsqrt.pop %v1969
  %v2031 = vrsqrt.pop %v1970
  %v2032 = vrsqrt.pop %v1971
  %v2033 = vrsqrt.pop %v1972
  %v2034 = vrsqrt.pop %v1973
  %v2035 = vrsqrt.pop %v1974
  %v2036 = vrsqrt.pop %v1975
  %v2037 = vrsqrt.pop %v1976
  %v2038 = vrsqrt.pop %v1977
  %v2039 = vrsqrt.pop %v1978
  %v2040 = vmul.f32 %v1857, %v1979
  %v2041 = vmul.f32 %v1858, %v1980
  %v2042 = vmul.f32 %v1859, %v1981
  %v2043 = vmul.f32 %v1860, %v1982
  %v2044 = vmul.f32 %v1861, %v1983
  %v2045 = vmul.f32 %v1862, %v1984
  %v2046 = vmul.f32 %v1863, %v1985
  %v2047 = vmul.f32 %v1864, %v1986
  %v2048 = vmul.f32 %v1865, %v1987
  %v2049 = vmul.f32 %v1866, %v1988
  %v2050 = vmul.f32 %v1867, %v1989
  %v2051 = vmul.f32 %v1868, %v1990
  %v2052 = vmul.f32 %v1869, %v1991
  %v2053 = vmul.f32 %v1870, %v1992
  %v2054 = vmul.f32 %v1871, %v1993
  %v2055 = vmul.f32 %v1872, %v1994
  %v2056 = vmul.f32 %v1873, %v1995
  %v2057 = vmul.f32 %v1874, %v1996
  %v2058 = vmul.f32 %v1875, %v1997
  %v2059 = vmul.f32 %v1876, %v1998
  %v2060 = vmul.f32 %v1877, %v1999
  %v2061 = vmul.f32 %v1878, %v2000
  %v2062 = vmul.f32 %v1879, %v2001
  %v2063 = vmul.f32 %v1880, %v2002
  %v2064 = vmul.f32 %v1881, %v2003
  %v2065 = vmul.f32 %v1882, %v2004
  %v2066 = vmul.f32 %v1883, %v2005
  %v2067 = vmul.f32 %v1884, %v2006
  %v2068 = vmul.f32 %v1885, %v2007
  %v2069 = vmul.f32 %v1886, %v2008
  %v2070 = vmul.f32 %v1887, %v2009
  %v2071 = vmul.f32 %v1888, %v2010
  %v2072 = vmul.f32 %v1889, %v2011
  %v2073 = vmul.f32 %v1890, %v2012
  %v2074 = vmul.f32 %v1891, %v2013
  %v2075 = vmul.f32 %v1892, %v2014
  %v2076 = vmul.f32 %v1893, %v2015
  %v2077 = vmul.f32 %v1894, %v2016
  %v2078 = vmul.f32 %v1895, %v2017
  %v2079 = vmul.f32 %v1896, %v2018
  %v2080 = vmul.f32 %v1897, %v2019
  %v2081 = vmul.f32 %v1898, %v2020
  %v2082 = vmul.f32 %v1899, %v2021
  %v2083 = vmul.f32 %v1900, %v2022
  %v2084 = vmul.f32 %v1901, %v2023
  %v2085 = vmul.f32 %v1902, %v2024
  %v2086 = vmul.f32 %v1903, %v2025
  %v2087 = vmul.f32 %v1904, %v2026
  %v2088 = vmul.f32 %v1905, %v2027
  %v2089 = vmul.f32 %v1906, %v2028
  %v2090 = vmul.f32 %v1907, %v2029
  %v2091 = vmul.f32 %v1908, %v2030
  %v2092 = vmul.f32 %v1909, %v2031
  %v2093 = vmul.f32 %v1910, %v2032
  %v2094 = vmul.f32 %v1911, %v2033
  %v2095 = vmul.f32 %v1912, %v2034
  %v2096 = vmul.f32 %v1913, %v2035
  %v2097 = vmul.f32 %v1914, %v2036
  %v2098 = vmul.f32 %v1915, %v2037
  %v2099 = vmul.f32 %v1916, %v2038
  %v2100 = vmul.f32 %v1917, %v2039
  %2102 = vset.pattern.permute.xlu0 0
  %2103 = vperm.xlu0 %2102, %v2040
  %v2104 = vpop.permute.xlu0 %2103
  %2107 = vset.pattern.permute.xlu0 0
  %2108 = vperm.xlu0 %2107, %v2041
  %v2109 = vpop.permute.xlu0 %2108
  %2112 = vset.pattern.permute.xlu0 0
  %2113 = vperm.xlu0 %2112, %v2042
  %v2114 = vpop.permute.xlu0 %2113
  %2117 = vset.pattern.permute.xlu0 0
  %2118 = vperm.xlu0 %2117, %v2043
  %v2119 = vpop.permute.xlu0 %2118
  %2122 = vset.pattern.permute.xlu0 0
  %2123 = vperm.xlu0 %2122, %v2044
  %v2124 = vpop.permute.xlu0 %2123
  %2127 = vset.pattern.permute.xlu0 0
  %2128 = vperm.xlu0 %2127, %v2045
  %v2129 = vpop.permute.xlu0 %2128
  %2132 = vset.pattern.permute.xlu0 0
  %2133 = vperm.xlu0 %2132, %v2046
  %v2134 = vpop.permute.xlu0 %2133
  %2137 = vset.pattern.permute.xlu0 0
  %2138 = vperm.xlu0 %2137, %v2047
  %v2139 = vpop.permute.xlu0 %2138
  %2142 = vset.pattern.permute.xlu0 0
  %2143 = vperm.xlu0 %2142, %v2048
  %v2144 = vpop.permute.xlu0 %2143
  %2147 = vset.pattern.permute.xlu0 0
  %2148 = vperm.xlu0 %2147, %v2049
  %v2149 = vpop.permute.xlu0 %2148
  %2152 = vset.pattern.permute.xlu0 0
  %2153 = vperm.xlu0 %2152, %v2050
  %v2154 = vpop.permute.xlu0 %2153
  %2157 = vset.pattern.permute.xlu0 0
  %2158 = vperm.xlu0 %2157, %v2051
  %v2159 = vpop.permute.xlu0 %2158
  %2162 = vset.pattern.permute.xlu0 0
  %2163 = vperm.xlu0 %2162, %v2052
  %v2164 = vpop.permute.xlu0 %2163
  %2167 = vset.pattern.permute.xlu0 0
  %2168 = vperm.xlu0 %2167, %v2053
  %v2169 = vpop.permute.xlu0 %2168
  %2172 = vset.pattern.permute.xlu0 0
  %2173 = vperm.xlu0 %2172, %v2054
  %v2174 = vpop.permute.xlu0 %2173
  %2177 = vset.pattern.permute.xlu0 0
  %2178 = vperm.xlu0 %2177, %v2055
  %v2179 = vpop.permute.xlu0 %2178
  %2182 = vset.pattern.permute.xlu0 0
  %2183 = vperm.xlu0 %2182, %v2056
  %v2184 = vpop.permute.xlu0 %2183
  %2187 = vset.pattern.permute.xlu0 0
  %2188 = vperm.xlu0 %2187, %v2057
  %v2189 = vpop.permute.xlu0 %2188
  %2192 = vset.pattern.permute.xlu0 0
  %2193 = vperm.xlu0 %2192, %v2058
  %v2194 = vpop.permute.xlu0 %2193
  %2197 = vset.pattern.permute.xlu0 0
  %2198 = vperm.xlu0 %2197, %v2059
  %v2199 = vpop.permute.xlu0 %2198
  %2202 = vset.pattern.permute.xlu0 0
  %2203 = vperm.xlu0 %2202, %v2060
  %v2204 = vpop.permute.xlu0 %2203
  %2207 = vset.pattern.permute.xlu0 0
  %2208 = vperm.xlu0 %2207, %v2061
  %v2209 = vpop.permute.xlu0 %2208
  %2212 = vset.pattern.permute.xlu0 0
  %2213 = vperm.xlu0 %2212, %v2062
  %v2214 = vpop.permute.xlu0 %2213
  %2217 = vset.pattern.permute.xlu0 0
  %2218 = vperm.xlu0 %2217, %v2063
  %v2219 = vpop.permute.xlu0 %2218
  %2222 = vset.pattern.permute.xlu0 0
  %2223 = vperm.xlu0 %2222, %v2064
  %v2224 = vpop.permute.xlu0 %2223
  %2227 = vset.pattern.permute.xlu0 0
  %2228 = vperm.xlu0 %2227, %v2065
  %v2229 = vpop.permute.xlu0 %2228
  %2232 = vset.pattern.permute.xlu0 0
  %2233 = vperm.xlu0 %2232, %v2066
  %v2234 = vpop.permute.xlu0 %2233
  %2237 = vset.pattern.permute.xlu0 0
  %2238 = vperm.xlu0 %2237, %v2067
  %v2239 = vpop.permute.xlu0 %2238
  %2242 = vset.pattern.permute.xlu0 0
  %2243 = vperm.xlu0 %2242, %v2068
  %v2244 = vpop.permute.xlu0 %2243
  %2247 = vset.pattern.permute.xlu0 0
  %2248 = vperm.xlu0 %2247, %v2069
  %v2249 = vpop.permute.xlu0 %2248
  %2252 = vset.pattern.permute.xlu0 0
  %2253 = vperm.xlu0 %2252, %v2070
  %v2254 = vpop.permute.xlu0 %2253
  %2257 = vset.pattern.permute.xlu0 0
  %2258 = vperm.xlu0 %2257, %v2071
  %v2259 = vpop.permute.xlu0 %2258
  %2262 = vset.pattern.permute.xlu0 0
  %2263 = vperm.xlu0 %2262, %v2072
  %v2264 = vpop.permute.xlu0 %2263
  %2267 = vset.pattern.permute.xlu0 0
  %2268 = vperm.xlu0 %2267, %v2073
  %v2269 = vpop.permute.xlu0 %2268
  %2272 = vset.pattern.permute.xlu0 0
  %2273 = vperm.xlu0 %2272, %v2074
  %v2274 = vpop.permute.xlu0 %2273
  %2277 = vset.pattern.permute.xlu0 0
  %2278 = vperm.xlu0 %2277, %v2075
  %v2279 = vpop.permute.xlu0 %2278
  %2282 = vset.pattern.permute.xlu0 0
  %2283 = vperm.xlu0 %2282, %v2076
  %v2284 = vpop.permute.xlu0 %2283
  %2287 = vset.pattern.permute.xlu0 0
  %2288 = vperm.xlu0 %2287, %v2077
  %v2289 = vpop.permute.xlu0 %2288
  %2292 = vset.pattern.permute.xlu0 0
  %2293 = vperm.xlu0 %2292, %v2078
  %v2294 = vpop.permute.xlu0 %2293
  %2297 = vset.pattern.permute.xlu0 0
  %2298 = vperm.xlu0 %2297, %v2079
  %v2299 = vpop.permute.xlu0 %2298
  %2302 = vset.pattern.permute.xlu0 0
  %2303 = vperm.xlu0 %2302, %v2080
  %v2304 = vpop.permute.xlu0 %2303
  %2307 = vset.pattern.permute.xlu0 0
  %2308 = vperm.xlu0 %2307, %v2081
  %v2309 = vpop.permute.xlu0 %2308
  %2312 = vset.pattern.permute.xlu0 0
  %2313 = vperm.xlu0 %2312, %v2082
  %v2314 = vpop.permute.xlu0 %2313
  %2317 = vset.pattern.permute.xlu0 0
  %2318 = vperm.xlu0 %2317, %v2083
  %v2319 = vpop.permute.xlu0 %2318
  %2322 = vset.pattern.permute.xlu0 0
  %2323 = vperm.xlu0 %2322, %v2084
  %v2324 = vpop.permute.xlu0 %2323
  %2327 = vset.pattern.permute.xlu0 0
  %2328 = vperm.xlu0 %2327, %v2085
  %v2329 = vpop.permute.xlu0 %2328
  %2332 = vset.pattern.permute.xlu0 0
  %2333 = vperm.xlu0 %2332, %v2086
  %v2334 = vpop.permute.xlu0 %2333
  %2337 = vset.pattern.permute.xlu0 0
  %2338 = vperm.xlu0 %2337, %v2087
  %v2339 = vpop.permute.xlu0 %2338
  %2342 = vset.pattern.permute.xlu0 0
  %2343 = vperm.xlu0 %2342, %v2088
  %v2344 = vpop.permute.xlu0 %2343
  %2347 = vset.pattern.permute.xlu0 0
  %2348 = vperm.xlu0 %2347, %v2089
  %v2349 = vpop.permute.xlu0 %2348
  %2352 = vset.pattern.permute.xlu0 0
  %2353 = vperm.xlu0 %2352, %v2090
  %v2354 = vpop.permute.xlu0 %2353
  %2357 = vset.pattern.permute.xlu0 0
  %2358 = vperm.xlu0 %2357, %v2091
  %v2359 = vpop.permute.xlu0 %2358
  %2362 = vset.pattern.permute.xlu0 0
  %2363 = vperm.xlu0 %2362, %v2092
  %v2364 = vpop.permute.xlu0 %2363
  %2367 = vset.pattern.permute.xlu0 0
  %2368 = vperm.xlu0 %2367, %v2093
  %v2369 = vpop.permute.xlu0 %2368
  %2372 = vset.pattern.permute.xlu0 0
  %2373 = vperm.xlu0 %2372, %v2094
  %v2374 = vpop.permute.xlu0 %2373
  %2377 = vset.pattern.permute.xlu0 0
  %2378 = vperm.xlu0 %2377, %v2095
  %v2379 = vpop.permute.xlu0 %2378
  %2382 = vset.pattern.permute.xlu0 0
  %2383 = vperm.xlu0 %2382, %v2096
  %v2384 = vpop.permute.xlu0 %2383
  %2387 = vset.pattern.permute.xlu0 0
  %2388 = vperm.xlu0 %2387, %v2097
  %v2389 = vpop.permute.xlu0 %2388
  %2392 = vset.pattern.permute.xlu0 0
  %2393 = vperm.xlu0 %2392, %v2098
  %v2394 = vpop.permute.xlu0 %2393
  %2397 = vset.pattern.permute.xlu0 0
  %2398 = vperm.xlu0 %2397, %v2099
  %v2399 = vpop.permute.xlu0 %2398
  %2402 = vset.pattern.permute.xlu0 0
  %2403 = vperm.xlu0 %2402, %v2100
  %v2404 = vpop.permute.xlu0 %2403
  %v2406 = vmul.f32 %v1491, %v2104
  %v2407 = vmul.f32 %v1492, %v2109
  %v2408 = vmul.f32 %v1493, %v2114
  %v2409 = vmul.f32 %v1494, %v2119
  %v2410 = vmul.f32 %v1495, %v2124
  %v2411 = vmul.f32 %v1496, %v2129
  %v2412 = vmul.f32 %v1497, %v2134
  %v2413 = vmul.f32 %v1498, %v2139
  %v2414 = vmul.f32 %v1499, %v2144
  %v2415 = vmul.f32 %v1500, %v2149
  %v2416 = vmul.f32 %v1501, %v2154
  %v2417 = vmul.f32 %v1502, %v2159
  %v2418 = vmul.f32 %v1503, %v2164
  %v2419 = vmul.f32 %v1504, %v2169
  %v2420 = vmul.f32 %v1505, %v2174
  %v2421 = vmul.f32 %v1506, %v2179
  %v2422 = vmul.f32 %v1507, %v2184
  %v2423 = vmul.f32 %v1508, %v2189
  %v2424 = vmul.f32 %v1509, %v2194
  %v2425 = vmul.f32 %v1510, %v2199
  %v2426 = vmul.f32 %v1511, %v2204
  %v2427 = vmul.f32 %v1512, %v2209
  %v2428 = vmul.f32 %v1513, %v2214
  %v2429 = vmul.f32 %v1514, %v2219
  %v2430 = vmul.f32 %v1515, %v2224
  %v2431 = vmul.f32 %v1516, %v2229
  %v2432 = vmul.f32 %v1517, %v2234
  %v2433 = vmul.f32 %v1518, %v2239
  %v2434 = vmul.f32 %v1519, %v2244
  %v2435 = vmul.f32 %v1520, %v2249
  %v2436 = vmul.f32 %v1521, %v2254
  %v2437 = vmul.f32 %v1522, %v2259
  %v2438 = vmul.f32 %v1523, %v2264
  %v2439 = vmul.f32 %v1524, %v2269
  %v2440 = vmul.f32 %v1525, %v2274
  %v2441 = vmul.f32 %v1526, %v2279
  %v2442 = vmul.f32 %v1527, %v2284
  %v2443 = vmul.f32 %v1528, %v2289
  %v2444 = vmul.f32 %v1529, %v2294
  %v2445 = vmul.f32 %v1530, %v2299
  %v2446 = vmul.f32 %v1531, %v2304
  %v2447 = vmul.f32 %v1532, %v2309
  %v2448 = vmul.f32 %v1533, %v2314
  %v2449 = vmul.f32 %v1534, %v2319
  %v2450 = vmul.f32 %v1535, %v2324
  %v2451 = vmul.f32 %v1536, %v2329
  %v2452 = vmul.f32 %v1537, %v2334
  %v2453 = vmul.f32 %v1538, %v2339
  %v2454 = vmul.f32 %v1539, %v2344
  %v2455 = vmul.f32 %v1540, %v2349
  %v2456 = vmul.f32 %v1541, %v2354
  %v2457 = vmul.f32 %v1542, %v2359
  %v2458 = vmul.f32 %v1543, %v2364
  %v2459 = vmul.f32 %v1544, %v2369
  %v2460 = vmul.f32 %v1545, %v2374
  %v2461 = vmul.f32 %v1546, %v2379
  %v2462 = vmul.f32 %v1547, %v2384
  %v2463 = vmul.f32 %v1548, %v2389
  %v2464 = vmul.f32 %v1549, %v2394
  %v2465 = vmul.f32 %v1550, %v2399
  %v2466 = vmul.f32 %v1551, %v2404
  %v2467 = vld [vmem:[%s3] sm:$0xff]
  %v2468 = vld [vmem:[%s3 + $0x8] sm:$0xff]
  %v2469 = vld [vmem:[%s3 + $0x10] sm:$0xff]
  %v2470 = vld [vmem:[%s3 + $0x18] sm:$0xff]
  %v2471 = vld [vmem:[%s3 + $0x20] sm:$0xff]
  %v2472 = vld [vmem:[%s3 + $0x28] sm:$0xff]
  %v2473 = vld [vmem:[%s3 + $0x30] sm:$0xff]
  %v2474 = vld [vmem:[%s3 + $0x38] sm:$0xff]
  %v2475 = vld [vmem:[%s3 + $0x40] sm:$0xff]
  %v2476 = vld [vmem:[%s3 + $0x48] sm:$0xff]
  %v2477 = vld [vmem:[%s3 + $0x50] sm:$0xff]
  %v2478 = vld [vmem:[%s3 + $0x58] sm:$0xff]
  %v2479 = vld [vmem:[%s3 + $0x60] sm:$0xff]
  %v2480 = vld [vmem:[%s3 + $0x68] sm:$0xff]
  %v2481 = vld [vmem:[%s3 + $0x70] sm:$0xff]
  %v2482 = vld [vmem:[%s3 + $0x78] sm:$0xff]
  %v2483 = vld [vmem:[%s3 + $0x80] sm:$0xff]
  %v2484 = vld [vmem:[%s3 + $0x88] sm:$0xff]
  %v2485 = vld [vmem:[%s3 + $0x90] sm:$0xff]
  %v2486 = vld [vmem:[%s3 + $0x98] sm:$0xff]
  %v2487 = vld [vmem:[%s3 + $0xa0] sm:$0xff]
  %v2488 = vld [vmem:[%s3 + $0xa8] sm:$0xff]
  %v2489 = vld [vmem:[%s3 + $0xb0] sm:$0xff]
  %v2490 = vld [vmem:[%s3 + $0xb8] sm:$0xff]
  %v2491 = vld [vmem:[%s3 + $0xc0] sm:$0xff]
  %v2492 = vld [vmem:[%s3 + $0xc8] sm:$0xff]
  %v2493 = vld [vmem:[%s3 + $0xd0] sm:$0xff]
  %v2494 = vld [vmem:[%s3 + $0xd8] sm:$0xff]
  %v2495 = vld [vmem:[%s3 + $0xe0] sm:$0xff]
  %v2496 = vld [vmem:[%s3 + $0xe8] sm:$0xff]
  %v2497 = vld [vmem:[%s3 + $0xf0] sm:$0xff]
  %v2498 = vld [vmem:[%s3 + $0xf8] sm:$0xff]
  %v2499 = vld [vmem:[%s3 + $0x100] sm:$0xff]
  %v2500 = vld [vmem:[%s3 + $0x108] sm:$0xff]
  %v2501 = vld [vmem:[%s3 + $0x110] sm:$0xff]
  %v2502 = vld [vmem:[%s3 + $0x118] sm:$0xff]
  %v2503 = vld [vmem:[%s3 + $0x120] sm:$0xff]
  %v2504 = vld [vmem:[%s3 + $0x128] sm:$0xff]
  %v2505 = vld [vmem:[%s3 + $0x130] sm:$0xff]
  %v2506 = vld [vmem:[%s3 + $0x138] sm:$0xff]
  %v2507 = vld [vmem:[%s3 + $0x140] sm:$0xff]
  %v2508 = vld [vmem:[%s3 + $0x148] sm:$0xff]
  %v2509 = vld [vmem:[%s3 + $0x150] sm:$0xff]
  %v2510 = vld [vmem:[%s3 + $0x158] sm:$0xff]
  %v2511 = vld [vmem:[%s3 + $0x160] sm:$0xff]
  %v2512 = vld [vmem:[%s3 + $0x168] sm:$0xff]
  %v2513 = vld [vmem:[%s3 + $0x170] sm:$0xff]
  %v2514 = vld [vmem:[%s3 + $0x178] sm:$0xff]
  %v2515 = vld [vmem:[%s3 + $0x180] sm:$0xff]
  %v2516 = vld [vmem:[%s3 + $0x188] sm:$0xff]
  %v2517 = vld [vmem:[%s3 + $0x190] sm:$0xff]
  %v2518 = vld [vmem:[%s3 + $0x198] sm:$0xff]
  %v2519 = vld [vmem:[%s3 + $0x1a0] sm:$0xff]
  %v2520 = vld [vmem:[%s3 + $0x1a8] sm:$0xff]
  %v2521 = vld [vmem:[%s3 + $0x1b0] sm:$0xff]
  %v2522 = vld [vmem:[%s3 + $0x1b8] sm:$0xff]
  %v2523 = vld [vmem:[%s3 + $0x1c0] sm:$0xff]
  %v2524 = vld [vmem:[%s3 + $0x1c8] sm:$0xff]
  %v2525 = vld [vmem:[%s3 + $0x1d0] sm:$0xff]
  %v2526 = vld [vmem:[%s3 + $0x1d8] sm:$0xff]
  %v2527 = vld [vmem:[%s3 + $0x1e0] sm:$0xff]
  %2529 = vset.pattern.permute.xlu0 0
  %2530 = vperm.xlu0 %2529, %v2467
  %v2531 = vpop.permute.xlu0 %2530
  %2534 = vset.pattern.permute.xlu0 0
  %2535 = vperm.xlu0 %2534, %v2468
  %v2536 = vpop.permute.xlu0 %2535
  %2539 = vset.pattern.permute.xlu0 0
  %2540 = vperm.xlu0 %2539, %v2469
  %v2541 = vpop.permute.xlu0 %2540
  %2544 = vset.pattern.permute.xlu0 0
  %2545 = vperm.xlu0 %2544, %v2470
  %v2546 = vpop.permute.xlu0 %2545
  %2549 = vset.pattern.permute.xlu0 0
  %2550 = vperm.xlu0 %2549, %v2471
  %v2551 = vpop.permute.xlu0 %2550
  %2554 = vset.pattern.permute.xlu0 0
  %2555 = vperm.xlu0 %2554, %v2472
  %v2556 = vpop.permute.xlu0 %2555
  %2559 = vset.pattern.permute.xlu0 0
  %2560 = vperm.xlu0 %2559, %v2473
  %v2561 = vpop.permute.xlu0 %2560
  %2564 = vset.pattern.permute.xlu0 0
  %2565 = vperm.xlu0 %2564, %v2474
  %v2566 = vpop.permute.xlu0 %2565
  %2569 = vset.pattern.permute.xlu0 0
  %2570 = vperm.xlu0 %2569, %v2475
  %v2571 = vpop.permute.xlu0 %2570
  %2574 = vset.pattern.permute.xlu0 0
  %2575 = vperm.xlu0 %2574, %v2476
  %v2576 = vpop.permute.xlu0 %2575
  %2579 = vset.pattern.permute.xlu0 0
  %2580 = vperm.xlu0 %2579, %v2477
  %v2581 = vpop.permute.xlu0 %2580
  %2584 = vset.pattern.permute.xlu0 0
  %2585 = vperm.xlu0 %2584, %v2478
  %v2586 = vpop.permute.xlu0 %2585
  %2589 = vset.pattern.permute.xlu0 0
  %2590 = vperm.xlu0 %2589, %v2479
  %v2591 = vpop.permute.xlu0 %2590
  %2594 = vset.pattern.permute.xlu0 0
  %2595 = vperm.xlu0 %2594, %v2480
  %v2596 = vpop.permute.xlu0 %2595
  %2599 = vset.pattern.permute.xlu0 0
  %2600 = vperm.xlu0 %2599, %v2481
  %v2601 = vpop.permute.xlu0 %2600
  %2604 = vset.pattern.permute.xlu0 0
  %2605 = vperm.xlu0 %2604, %v2482
  %v2606 = vpop.permute.xlu0 %2605
  %2609 = vset.pattern.permute.xlu0 0
  %2610 = vperm.xlu0 %2609, %v2483
  %v2611 = vpop.permute.xlu0 %2610
  %2614 = vset.pattern.permute.xlu0 0
  %2615 = vperm.xlu0 %2614, %v2484
  %v2616 = vpop.permute.xlu0 %2615
  %2619 = vset.pattern.permute.xlu0 0
  %2620 = vperm.xlu0 %2619, %v2485
  %v2621 = vpop.permute.xlu0 %2620
  %2624 = vset.pattern.permute.xlu0 0
  %2625 = vperm.xlu0 %2624, %v2486
  %v2626 = vpop.permute.xlu0 %2625
  %2629 = vset.pattern.permute.xlu0 0
  %2630 = vperm.xlu0 %2629, %v2487
  %v2631 = vpop.permute.xlu0 %2630
  %2634 = vset.pattern.permute.xlu0 0
  %2635 = vperm.xlu0 %2634, %v2488
  %v2636 = vpop.permute.xlu0 %2635
  %2639 = vset.pattern.permute.xlu0 0
  %2640 = vperm.xlu0 %2639, %v2489
  %v2641 = vpop.permute.xlu0 %2640
  %2644 = vset.pattern.permute.xlu0 0
  %2645 = vperm.xlu0 %2644, %v2490
  %v2646 = vpop.permute.xlu0 %2645
  %2649 = vset.pattern.permute.xlu0 0
  %2650 = vperm.xlu0 %2649, %v2491
  %v2651 = vpop.permute.xlu0 %2650
  %2654 = vset.pattern.permute.xlu0 0
  %2655 = vperm.xlu0 %2654, %v2492
  %v2656 = vpop.permute.xlu0 %2655
  %2659 = vset.pattern.permute.xlu0 0
  %2660 = vperm.xlu0 %2659, %v2493
  %v2661 = vpop.permute.xlu0 %2660
  %2664 = vset.pattern.permute.xlu0 0
  %2665 = vperm.xlu0 %2664, %v2494
  %v2666 = vpop.permute.xlu0 %2665
  %2669 = vset.pattern.permute.xlu0 0
  %2670 = vperm.xlu0 %2669, %v2495
  %v2671 = vpop.permute.xlu0 %2670
  %2674 = vset.pattern.permute.xlu0 0
  %2675 = vperm.xlu0 %2674, %v2496
  %v2676 = vpop.permute.xlu0 %2675
  %2679 = vset.pattern.permute.xlu0 0
  %2680 = vperm.xlu0 %2679, %v2497
  %v2681 = vpop.permute.xlu0 %2680
  %2684 = vset.pattern.permute.xlu0 0
  %2685 = vperm.xlu0 %2684, %v2498
  %v2686 = vpop.permute.xlu0 %2685
  %2689 = vset.pattern.permute.xlu0 0
  %2690 = vperm.xlu0 %2689, %v2499
  %v2691 = vpop.permute.xlu0 %2690
  %2694 = vset.pattern.permute.xlu0 0
  %2695 = vperm.xlu0 %2694, %v2500
  %v2696 = vpop.permute.xlu0 %2695
  %2699 = vset.pattern.permute.xlu0 0
  %2700 = vperm.xlu0 %2699, %v2501
  %v2701 = vpop.permute.xlu0 %2700
  %2704 = vset.pattern.permute.xlu0 0
  %2705 = vperm.xlu0 %2704, %v2502
  %v2706 = vpop.permute.xlu0 %2705
  %2709 = vset.pattern.permute.xlu0 0
  %2710 = vperm.xlu0 %2709, %v2503
  %v2711 = vpop.permute.xlu0 %2710
  %2714 = vset.pattern.permute.xlu0 0
  %2715 = vperm.xlu0 %2714, %v2504
  %v2716 = vpop.permute.xlu0 %2715
  %2719 = vset.pattern.permute.xlu0 0
  %2720 = vperm.xlu0 %2719, %v2505
  %v2721 = vpop.permute.xlu0 %2720
  %2724 = vset.pattern.permute.xlu0 0
  %2725 = vperm.xlu0 %2724, %v2506
  %v2726 = vpop.permute.xlu0 %2725
  %2729 = vset.pattern.permute.xlu0 0
  %2730 = vperm.xlu0 %2729, %v2507
  %v2731 = vpop.permute.xlu0 %2730
  %2734 = vset.pattern.permute.xlu0 0
  %2735 = vperm.xlu0 %2734, %v2508
  %v2736 = vpop.permute.xlu0 %2735
  %2739 = vset.pattern.permute.xlu0 0
  %2740 = vperm.xlu0 %2739, %v2509
  %v2741 = vpop.permute.xlu0 %2740
  %2744 = vset.pattern.permute.xlu0 0
  %2745 = vperm.xlu0 %2744, %v2510
  %v2746 = vpop.permute.xlu0 %2745
  %2749 = vset.pattern.permute.xlu0 0
  %2750 = vperm.xlu0 %2749, %v2511
  %v2751 = vpop.permute.xlu0 %2750
  %2754 = vset.pattern.permute.xlu0 0
  %2755 = vperm.xlu0 %2754, %v2512
  %v2756 = vpop.permute.xlu0 %2755
  %2759 = vset.pattern.permute.xlu0 0
  %2760 = vperm.xlu0 %2759, %v2513
  %v2761 = vpop.permute.xlu0 %2760
  %2764 = vset.pattern.permute.xlu0 0
  %2765 = vperm.xlu0 %2764, %v2514
  %v2766 = vpop.permute.xlu0 %2765
  %2769 = vset.pattern.permute.xlu0 0
  %2770 = vperm.xlu0 %2769, %v2515
  %v2771 = vpop.permute.xlu0 %2770
  %2774 = vset.pattern.permute.xlu0 0
  %2775 = vperm.xlu0 %2774, %v2516
  %v2776 = vpop.permute.xlu0 %2775
  %2779 = vset.pattern.permute.xlu0 0
  %2780 = vperm.xlu0 %2779, %v2517
  %v2781 = vpop.permute.xlu0 %2780
  %2784 = vset.pattern.permute.xlu0 0
  %2785 = vperm.xlu0 %2784, %v2518
  %v2786 = vpop.permute.xlu0 %2785
  %2789 = vset.pattern.permute.xlu0 0
  %2790 = vperm.xlu0 %2789, %v2519
  %v2791 = vpop.permute.xlu0 %2790
  %2794 = vset.pattern.permute.xlu0 0
  %2795 = vperm.xlu0 %2794, %v2520
  %v2796 = vpop.permute.xlu0 %2795
  %2799 = vset.pattern.permute.xlu0 0
  %2800 = vperm.xlu0 %2799, %v2521
  %v2801 = vpop.permute.xlu0 %2800
  %2804 = vset.pattern.permute.xlu0 0
  %2805 = vperm.xlu0 %2804, %v2522
  %v2806 = vpop.permute.xlu0 %2805
  %2809 = vset.pattern.permute.xlu0 0
  %2810 = vperm.xlu0 %2809, %v2523
  %v2811 = vpop.permute.xlu0 %2810
  %2814 = vset.pattern.permute.xlu0 0
  %2815 = vperm.xlu0 %2814, %v2524
  %v2816 = vpop.permute.xlu0 %2815
  %2819 = vset.pattern.permute.xlu0 0
  %2820 = vperm.xlu0 %2819, %v2525
  %v2821 = vpop.permute.xlu0 %2820
  %2824 = vset.pattern.permute.xlu0 0
  %2825 = vperm.xlu0 %2824, %v2526
  %v2826 = vpop.permute.xlu0 %2825
  %2829 = vset.pattern.permute.xlu0 0
  %2830 = vperm.xlu0 %2829, %v2527
  %v2831 = vpop.permute.xlu0 %2830
  %v2833 = vadd.f32 %v2406, %v2531
  %v2834 = vadd.f32 %v2407, %v2536
  %v2835 = vadd.f32 %v2408, %v2541
  %v2836 = vadd.f32 %v2409, %v2546
  %v2837 = vadd.f32 %v2410, %v2551
  %v2838 = vadd.f32 %v2411, %v2556
  %v2839 = vadd.f32 %v2412, %v2561
  %v2840 = vadd.f32 %v2413, %v2566
  %v2841 = vadd.f32 %v2414, %v2571
  %v2842 = vadd.f32 %v2415, %v2576
  %v2843 = vadd.f32 %v2416, %v2581
  %v2844 = vadd.f32 %v2417, %v2586
  %v2845 = vadd.f32 %v2418, %v2591
  %v2846 = vadd.f32 %v2419, %v2596
  %v2847 = vadd.f32 %v2420, %v2601
  %v2848 = vadd.f32 %v2421, %v2606
  %v2849 = vadd.f32 %v2422, %v2611
  %v2850 = vadd.f32 %v2423, %v2616
  %v2851 = vadd.f32 %v2424, %v2621
  %v2852 = vadd.f32 %v2425, %v2626
  %v2853 = vadd.f32 %v2426, %v2631
  %v2854 = vadd.f32 %v2427, %v2636
  %v2855 = vadd.f32 %v2428, %v2641
  %v2856 = vadd.f32 %v2429, %v2646
  %v2857 = vadd.f32 %v2430, %v2651
  %v2858 = vadd.f32 %v2431, %v2656
  %v2859 = vadd.f32 %v2432, %v2661
  %v2860 = vadd.f32 %v2433, %v2666
  %v2861 = vadd.f32 %v2434, %v2671
  %v2862 = vadd.f32 %v2435, %v2676
  %v2863 = vadd.f32 %v2436, %v2681
  %v2864 = vadd.f32 %v2437, %v2686
  %v2865 = vadd.f32 %v2438, %v2691
  %v2866 = vadd.f32 %v2439, %v2696
  %v2867 = vadd.f32 %v2440, %v2701
  %v2868 = vadd.f32 %v2441, %v2706
  %v2869 = vadd.f32 %v2442, %v2711
  %v2870 = vadd.f32 %v2443, %v2716
  %v2871 = vadd.f32 %v2444, %v2721
  %v2872 = vadd.f32 %v2445, %v2726
  %v2873 = vadd.f32 %v2446, %v2731
  %v2874 = vadd.f32 %v2447, %v2736
  %v2875 = vadd.f32 %v2448, %v2741
  %v2876 = vadd.f32 %v2449, %v2746
  %v2877 = vadd.f32 %v2450, %v2751
  %v2878 = vadd.f32 %v2451, %v2756
  %v2879 = vadd.f32 %v2452, %v2761
  %v2880 = vadd.f32 %v2453, %v2766
  %v2881 = vadd.f32 %v2454, %v2771
  %v2882 = vadd.f32 %v2455, %v2776
  %v2883 = vadd.f32 %v2456, %v2781
  %v2884 = vadd.f32 %v2457, %v2786
  %v2885 = vadd.f32 %v2458, %v2791
  %v2886 = vadd.f32 %v2459, %v2796
  %v2887 = vadd.f32 %v2460, %v2801
  %v2888 = vadd.f32 %v2461, %v2806
  %v2889 = vadd.f32 %v2462, %v2811
  %v2890 = vadd.f32 %v2463, %v2816
  %v2891 = vadd.f32 %v2464, %v2821
  %v2892 = vadd.f32 %v2465, %v2826
  %v2893 = vadd.f32 %v2466, %v2831
  %v2894 = vmax.f32 %v2833, 0.0
  %v2895 = vmax.f32 %v2834, 0.0
  %v2896 = vmax.f32 %v2835, 0.0
  %v2897 = vmax.f32 %v2836, 0.0
  %v2898 = vmax.f32 %v2837, 0.0
  %v2899 = vmax.f32 %v2838, 0.0
  %v2900 = vmax.f32 %v2839, 0.0
  %v2901 = vmax.f32 %v2840, 0.0
  %v2902 = vmax.f32 %v2841, 0.0
  %v2903 = vmax.f32 %v2842, 0.0
  %v2904 = vmax.f32 %v2843, 0.0
  %v2905 = vmax.f32 %v2844, 0.0
  %v2906 = vmax.f32 %v2845, 0.0
  %v2907 = vmax.f32 %v2846, 0.0
  %v2908 = vmax.f32 %v2847, 0.0
  %v2909 = vmax.f32 %v2848, 0.0
  %v2910 = vmax.f32 %v2849, 0.0
  %v2911 = vmax.f32 %v2850, 0.0
  %v2912 = vmax.f32 %v2851, 0.0
  %v2913 = vmax.f32 %v2852, 0.0
  %v2914 = vmax.f32 %v2853, 0.0
  %v2915 = vmax.f32 %v2854, 0.0
  %v2916 = vmax.f32 %v2855, 0.0
  %v2917 = vmax.f32 %v2856, 0.0
  %v2918 = vmax.f32 %v2857, 0.0
  %v2919 = vmax.f32 %v2858, 0.0
  %v2920 = vmax.f32 %v2859, 0.0
  %v2921 = vmax.f32 %v2860, 0.0
  %v2922 = vmax.f32 %v2861, 0.0
  %v2923 = vmax.f32 %v2862, 0.0
  %v2924 = vmax.f32 %v2863, 0.0
  %v2925 = vmax.f32 %v2864, 0.0
  %v2926 = vmax.f32 %v2865, 0.0
  %v2927 = vmax.f32 %v2866, 0.0
  %v2928 = vmax.f32 %v2867, 0.0
  %v2929 = vmax.f32 %v2868, 0.0
  %v2930 = vmax.f32 %v2869, 0.0
  %v2931 = vmax.f32 %v2870, 0.0
  %v2932 = vmax.f32 %v2871, 0.0
  %v2933 = vmax.f32 %v2872, 0.0
  %v2934 = vmax.f32 %v2873, 0.0
  %v2935 = vmax.f32 %v2874, 0.0
  %v2936 = vmax.f32 %v2875, 0.0
  %v2937 = vmax.f32 %v2876, 0.0
  %v2938 = vmax.f32 %v2877, 0.0
  %v2939 = vmax.f32 %v2878, 0.0
  %v2940 = vmax.f32 %v2879, 0.0
  %v2941 = vmax.f32 %v2880, 0.0
  %v2942 = vmax.f32 %v2881, 0.0
  %v2943 = vmax.f32 %v2882, 0.0
  %v2944 = vmax.f32 %v2883, 0.0
  %v2945 = vmax.f32 %v2884, 0.0
  %v2946 = vmax.f32 %v2885, 0.0
  %v2947 = vmax.f32 %v2886, 0.0
  %v2948 = vmax.f32 %v2887, 0.0
  %v2949 = vmax.f32 %v2888, 0.0
  %v2950 = vmax.f32 %v2889, 0.0
  %v2951 = vmax.f32 %v2890, 0.0
  %v2952 = vmax.f32 %v2891, 0.0
  %v2953 = vmax.f32 %v2892, 0.0
  %v2954 = vmax.f32 %v2893, 0.0
  %2955 = vst.msk [vmem:[%s4] sm:$0xff] %vm1246, %v2894
  %2956 = vst.msk [vmem:[%s4 + $0x8] sm:$0xff] %vm1246, %v2895
  %2957 = vst.msk [vmem:[%s4 + $0x10] sm:$0xff] %vm1246, %v2896
  %2958 = vst.msk [vmem:[%s4 + $0x18] sm:$0xff] %vm1246, %v2897
  %2959 = vst.msk [vmem:[%s4 + $0x20] sm:$0xff] %vm1246, %v2898
  %2960 = vst.msk [vmem:[%s4 + $0x28] sm:$0xff] %vm1246, %v2899
  %2961 = vst.msk [vmem:[%s4 + $0x30] sm:$0xff] %vm1246, %v2900
  %2962 = vst.msk [vmem:[%s4 + $0x38] sm:$0xff] %vm1246, %v2901
  %2963 = vst.msk [vmem:[%s4 + $0x40] sm:$0xff] %vm1246, %v2902
  %2964 = vst.msk [vmem:[%s4 + $0x48] sm:$0xff] %vm1246, %v2903
  %2965 = vst.msk [vmem:[%s4 + $0x50] sm:$0xff] %vm1246, %v2904
  %2966 = vst.msk [vmem:[%s4 + $0x58] sm:$0xff] %vm1246, %v2905
  %2967 = vst.msk [vmem:[%s4 + $0x60] sm:$0xff] %vm1246, %v2906
  %2968 = vst.msk [vmem:[%s4 + $0x68] sm:$0xff] %vm1246, %v2907
  %2969 = vst.msk [vmem:[%s4 + $0x70] sm:$0xff] %vm1246, %v2908
  %2970 = vst.msk [vmem:[%s4 + $0x78] sm:$0xff] %vm1246, %v2909
  %2971 = vst.msk [vmem:[%s4 + $0x80] sm:$0xff] %vm1246, %v2910
  %2972 = vst.msk [vmem:[%s4 + $0x88] sm:$0xff] %vm1246, %v2911
  %2973 = vst.msk [vmem:[%s4 + $0x90] sm:$0xff] %vm1246, %v2912
  %2974 = vst.msk [vmem:[%s4 + $0x98] sm:$0xff] %vm1246, %v2913
  %2975 = vst.msk [vmem:[%s4 + $0xa0] sm:$0xff] %vm1246, %v2914
  %2976 = vst.msk [vmem:[%s4 + $0xa8] sm:$0xff] %vm1246, %v2915
  %2977 = vst.msk [vmem:[%s4 + $0xb0] sm:$0xff] %vm1246, %v2916
  %2978 = vst.msk [vmem:[%s4 + $0xb8] sm:$0xff] %vm1246, %v2917
  %2979 = vst.msk [vmem:[%s4 + $0xc0] sm:$0xff] %vm1246, %v2918
  %2980 = vst.msk [vmem:[%s4 + $0xc8] sm:$0xff] %vm1246, %v2919
  %2981 = vst.msk [vmem:[%s4 + $0xd0] sm:$0xff] %vm1246, %v2920
  %2982 = vst.msk [vmem:[%s4 + $0xd8] sm:$0xff] %vm1246, %v2921
  %2983 = vst.msk [vmem:[%s4 + $0xe0] sm:$0xff] %vm1246, %v2922
  %2984 = vst.msk [vmem:[%s4 + $0xe8] sm:$0xff] %vm1246, %v2923
  %2985 = vst.msk [vmem:[%s4 + $0xf0] sm:$0xff] %vm1246, %v2924
  %2986 = vst.msk [vmem:[%s4 + $0xf8] sm:$0xff] %vm1246, %v2925
  %2987 = vst.msk [vmem:[%s4 + $0x100] sm:$0xff] %vm1246, %v2926
  %2988 = vst.msk [vmem:[%s4 + $0x108] sm:$0xff] %vm1246, %v2927
  %2989 = vst.msk [vmem:[%s4 + $0x110] sm:$0xff] %vm1246, %v2928
  %2990 = vst.msk [vmem:[%s4 + $0x118] sm:$0xff] %vm1246, %v2929
  %2991 = vst.msk [vmem:[%s4 + $0x120] sm:$0xff] %vm1246, %v2930
  %2992 = vst.msk [vmem:[%s4 + $0x128] sm:$0xff] %vm1246, %v2931
  %2993 = vst.msk [vmem:[%s4 + $0x130] sm:$0xff] %vm1246, %v2932
  %2994 = vst.msk [vmem:[%s4 + $0x138] sm:$0xff] %vm1246, %v2933
  %2995 = vst.msk [vmem:[%s4 + $0x140] sm:$0xff] %vm1246, %v2934
  %2996 = vst.msk [vmem:[%s4 + $0x148] sm:$0xff] %vm1246, %v2935
  %2997 = vst.msk [vmem:[%s4 + $0x150] sm:$0xff] %vm1246, %v2936
  %2998 = vst.msk [vmem:[%s4 + $0x158] sm:$0xff] %vm1246, %v2937
  %2999 = vst.msk [vmem:[%s4 + $0x160] sm:$0xff] %vm1246, %v2938
  %3000 = vst.msk [vmem:[%s4 + $0x168] sm:$0xff] %vm1246, %v2939
  %3001 = vst.msk [vmem:[%s4 + $0x170] sm:$0xff] %vm1246, %v2940
  %3002 = vst.msk [vmem:[%s4 + $0x178] sm:$0xff] %vm1246, %v2941
  %3003 = vst.msk [vmem:[%s4 + $0x180] sm:$0xff] %vm1246, %v2942
  %3004 = vst.msk [vmem:[%s4 + $0x188] sm:$0xff] %vm1246, %v2943
  %3005 = vst.msk [vmem:[%s4 + $0x190] sm:$0xff] %vm1246, %v2944
  %3006 = vst.msk [vmem:[%s4 + $0x198] sm:$0xff] %vm1246, %v2945
  %3007 = vst.msk [vmem:[%s4 + $0x1a0] sm:$0xff] %vm1246, %v2946
  %3008 = vst.msk [vmem:[%s4 + $0x1a8] sm:$0xff] %vm1246, %v2947
  %3009 = vst.msk [vmem:[%s4 + $0x1b0] sm:$0xff] %vm1246, %v2948
  %3010 = vst.msk [vmem:[%s4 + $0x1b8] sm:$0xff] %vm1246, %v2949
  %3011 = vst.msk [vmem:[%s4 + $0x1c0] sm:$0xff] %vm1246, %v2950
  %3012 = vst.msk [vmem:[%s4 + $0x1c8] sm:$0xff] %vm1246, %v2951
  %3013 = vst.msk [vmem:[%s4 + $0x1d0] sm:$0xff] %vm1246, %v2952
  %3014 = vst.msk [vmem:[%s4 + $0x1d8] sm:$0xff] %vm1246, %v2953
  %3015 = vst.msk [vmem:[%s4 + $0x1e0] sm:$0xff] %vm1246, %v2954
  // Predicated region
  $region18: #{_conv_bn_relu_impl.1} parent=0 // pred_check
    _
  $region19: #{_conv_bn_relu_impl.1} parent=0 // pred_check_branch
    %3017 = sbr.rel (0) target = $region21
  $region20: #{_conv_bn_relu_impl.1} parent=0 // pred_region
    _
  $region21: #{_conv_bn_relu_impl.1} parent=0 // pred_fallthru
    _
  // Predicated region
  $region22: #{_conv_bn_relu_impl.1} parent=0 // pred_check
    _
  $region23: #{_conv_bn_relu_impl.1} parent=0 // pred_check_branch
    %3019 = sbr.rel (0) target = $region25
  $region24: #{_conv_bn_relu_impl.1} parent=0 // pred_region
    _
  $region25: #{_conv_bn_relu_impl.1} parent=0 // pred_fallthru
    _

</llo_original>
